<compile_context>
chip_gen: v7x
topology: tpu7x:2x2x1
jax: 0.10.0
libtpu: 0.0.40
codegen_flags: <defaults>
</compile_context>

<pallas_src>
import jax
import jax.numpy as jnp
import numpy as np
from jax import lax
from jax.experimental import pallas as pl
from jax.experimental.pallas import tpu as pltpu

EPS = 1e-5
GROUPS = 4


# ---------------------------------------------------------------------------
# Host-side helpers
# ---------------------------------------------------------------------------
def _make_tap_masks(H, W):
    """0/1 validity mask per 3x3 tap, flattened over HW (zeros where the tap
    would read outside the image, i.e. the implicit padding)."""
    HW = H * W
    m = np.zeros((9, 1, HW), np.float32)
    for kh in range(3):
        for kw in range(3):
            dh, dw = kh - 1, kw - 1
            valid = np.zeros((H, W), np.float32)
            valid[max(0, -dh):min(H, H - dh), max(0, -dw):min(W, W - dw)] = 1.0
            m[kh * 3 + kw, 0] = valid.reshape(HW)
    return jnp.asarray(m)


def prepare_params(g1, b1, w1_oihw, g2, b2, w2_oihw):
    """gamma/beta -> (C,1) columns (C,HW layout); conv weights OIHW -> (Cout, 9*Cin)
    with columns ordered (kh, kw, cin) to match the in-kernel im2col row order."""
    o1, i1 = w1_oihw.shape[:2]
    o2, i2 = w2_oihw.shape[:2]
    return dict(
        g1=g1.reshape(i1, 1).astype(jnp.float32),
        b1=b1.reshape(i1, 1).astype(jnp.float32),
        w1=jnp.transpose(w1_oihw, (0, 2, 3, 1)).reshape(o1, 9 * i1).astype(jnp.float32),
        g2=g2.reshape(o1, 1).astype(jnp.float32),
        b2=b2.reshape(o1, 1).astype(jnp.float32),
        w2=jnp.transpose(w2_oihw, (0, 2, 3, 1)).reshape(o2, 9 * i2).astype(jnp.float32),
    )


# ---------------------------------------------------------------------------
# Fused BasicBlock kernel (one grid step == `nb` images)
# ---------------------------------------------------------------------------
def _make_kernel(nb, C, Cp, H, W):
    HW = H * W
    cpg1 = C // GROUPS
    cpg2 = Cp // GROUPS

    def _group_masks(channels, cpg):
        rid = lax.broadcasted_iota(jnp.int32, (channels, 1), 0)
        return [((rid >= g * cpg) & (rid < (g + 1) * cpg)).astype(jnp.float32)
                for g in range(GROUPS)]

    def _gn_relu(x, gamma, beta, gmasks, cpg):
        """GroupNorm(GROUPS) + ReLU on a (C, HW) tile. gamma/beta: (C, 1)."""
        denom = 1.0 / float(cpg * HW)
        s1 = jnp.sum(x, axis=1, keepdims=True)          # (C,1) per-channel sums (XLU)
        s2 = jnp.sum(x * x, axis=1, keepdims=True)      # (C,1)
        mu_c = jnp.zeros_like(s1)
        inv_c = jnp.zeros_like(s1)
        for g, m in enumerate(gmasks):                  # GROUPS tiny (1,1) reductions
            sl = slice(g * cpg, (g + 1) * cpg)
            mu = jnp.sum(s1[sl, :], axis=0, keepdims=True) * denom
            ex2 = jnp.sum(s2[sl, :], axis=0, keepdims=True) * denom
            inv = lax.rsqrt(jnp.maximum(ex2 - mu * mu, 0.0) + EPS)
            mu_c = mu_c + m * mu                        # broadcast back per group
            inv_c = inv_c + m * inv
        a = inv_c * gamma                               # fold affine: y = x*a + b
        b = beta - mu_c * a
        return jnp.maximum(x * a + b, 0.0)              # ReLU (+ quant == identity)

    def _conv3x3(y, w, masks_ref):
        """3x3 conv, stride 1, pad 1.  y: (Cin, HW), w: (Cout, 9*Cin).
        Taps built lane-dense via pltpu.roll + 0/1 halo mask, then ONE MXU matmul."""
        cols = []
        for t in range(9):
            dh, dw = t // 3 - 1, t % 3 - 1
            if dh == 0 and dw == 0:
                cols.append(y)
                continue
            shift = (-(dh * W + dw)) % HW
            shifted = pltpu.roll(y, shift=shift, axis=1)        # XLU lane rotate
            cols.append(shifted * masks_ref[t])                 # zero the halo (VPU)
        p = jnp.concatenate(cols, axis=0)                       # (9*Cin, HW) im2col
        return jnp.dot(w, p, preferred_element_type=jnp.float32)  # (Cout, HW)

    def kernel(x_ref, masks_ref, g1_ref, b1_ref, w1_ref, g2_ref, b2_ref, w2_ref,
               o_ref):
        gm1 = _group_masks(C, cpg1)
        gm2 = gm1 if Cp == C else _group_masks(Cp, cpg2)
        g1 = g1_ref[...]
        b1 = b1_ref[...]
        g2 = g2_ref[...]
        b2 = b2_ref[...]
        w1 = w1_ref[...]
        w2 = w2_ref[...]
        for n in range(nb):                              # images in this grid step
            x = x_ref[n]                                 # (C, HW), lane-dense load
            y1 = _gn_relu(x, g1, b1, gm1, cpg1)          # GN1 + ReLU (+quant)
            h1 = _conv3x3(y1, w1, masks_ref)             # conv1 -> (Cp, HW)
            y2 = _gn_relu(h1, g2, b2, gm2, cpg2)         # GN2 + ReLU (+quant)
            h2 = _conv3x3(y2, w2, masks_ref)             # conv2 -> (Cp, HW)
            o_ref[n] = h2 + x_ref[n]                     # residual, unmasked store

    return kernel


# ---------------------------------------------------------------------------
# Wrapper
# ---------------------------------------------------------------------------
def basic_block_forward(x_nchw, p, images_per_step=None):
    N, C, H, W = x_nchw.shape
    Cp, K1 = p["w1"].shape
    assert K1 == 9 * C
    assert C == Cp, "residual path (downsample=None) requires inplanes == planes"
    assert C % GROUPS == 0 and Cp % GROUPS == 0
    HW = H * W

    if images_per_step is None:
        # Largest divisor of N that still leaves >= 2 grid steps (feeds both
        # v7x TensorCores); on 1-TC v5e/v6e more images/step is never worse.
        nb = 1
        for d in range(N, 0, -1):
            if N % d == 0 and (N // d >= 2 or N == 1):
                nb = d
                break
    else:
        nb = images_per_step
        assert N % nb == 0

    x_flat = x_nchw.reshape(N, C, HW).astype(jnp.float32)   # contiguous -> free reshape
    masks = _make_tap_masks(H, W)                            # (9, 1, HW) halo masks

    kernel = _make_kernel(nb, C, Cp, H, W)
    out = pl.pallas_call(
        kernel,
        out_shape=jax.ShapeDtypeStruct((N, Cp, HW), jnp.float32),
        grid=(N // nb,),
        in_specs=[
            pl.BlockSpec((nb, C, HW), lambda i: (i, 0, 0)),      # x (lane-dense)
            pl.BlockSpec((9, 1, HW), lambda i: (0, 0, 0)),       # 3x3 halo masks
            pl.BlockSpec((C, 1), lambda i: (0, 0)),              # gn1 gamma
            pl.BlockSpec((C, 1), lambda i: (0, 0)),              # gn1 beta
            pl.BlockSpec((Cp, 9 * C), lambda i: (0, 0)),         # conv1 weight (Cout, 9Cin)
            pl.BlockSpec((Cp, 1), lambda i: (0, 0)),             # gn2 gamma
            pl.BlockSpec((Cp, 1), lambda i: (0, 0)),             # gn2 beta
            pl.BlockSpec((Cp, 9 * Cp), lambda i: (0, 0)),        # conv2 weight
        ],
        out_specs=pl.BlockSpec((nb, Cp, HW), lambda i: (i, 0, 0)),
        compiler_params=pltpu.CompilerParams(
            dimension_semantics=("parallel",)),                  # batch steps -> both TCs
    )(x_flat, masks, p["g1"], p["b1"], p["w1"], p["g2"], p["b2"], p["w2"])

    return out.reshape(N, Cp, H, W)                              # free reshape back to NCHW


# ---------------------------------------------------------------------------
# Pure-JAX reference (for correctness check)
# ---------------------------------------------------------------------------
def ref_forward(x, g1, b1, w1_oihw, g2, b2, w2_oihw):
    def gn(y, gamma, beta, groups=GROUPS):
        N, C, H, W = y.shape
        yg = y.reshape(N, groups, C // groups, H, W)
        mean = yg.mean(axis=(2, 3, 4), keepdims=True)
        var = ((yg - mean) ** 2).mean(axis=(2, 3, 4), keepdims=True)
        yn = ((yg - mean) / jnp.sqrt(var + EPS)).reshape(N, C, H, W)
        return yn * gamma[None, :, None, None] + beta[None, :, None, None]

    def conv(y, w_oihw):
        return lax.conv_general_dilated(
            y, w_oihw, window_strides=(1, 1), padding=((1, 1), (1, 1)),
            dimension_numbers=("NCHW", "OIHW", "NCHW"))

    out = jnp.maximum(gn(x, g1, b1), 0.0)
    out = conv(out, w1_oihw)
    out = jnp.maximum(gn(out, g2, b2), 0.0)
    out = conv(out, w2_oihw)
    return out + x


if __name__ == "__main__":
    key = jax.random.PRNGKey(0)
    N, C, H, W = 2, 8, 16, 16          # inplanes = planes = 8 (divisible by 4 groups)
    planes = 8

    ks = jax.random.split(key, 7)
    x = jax.random.normal(ks[0], (N, C, H, W), jnp.float32)
    g1 = 1.0 + 0.1 * jax.random.normal(ks[1], (C,), jnp.float32)
    b1 = 0.1 * jax.random.normal(ks[2], (C,), jnp.float32)
    g2 = 1.0 + 0.1 * jax.random.normal(ks[3], (planes,), jnp.float32)
    b2 = 0.1 * jax.random.normal(ks[4], (planes,), jnp.float32)
    w1_oihw = 0.1 * jax.random.normal(ks[5], (planes, C, 3, 3), jnp.float32)
    w2_oihw = 0.1 * jax.random.normal(ks[6], (planes, planes, 3, 3), jnp.float32)

    params = prepare_params(g1, b1, w1_oihw, g2, b2, w2_oihw)

    fwd = jax.jit(basic_block_forward)
    out = jax.block_until_ready(fwd(x, params))

    ref = jax.block_until_ready(ref_forward(x, g1, b1, w1_oihw, g2, b2, w2_oihw))
    np.testing.assert_allclose(np.asarray(out), np.asarray(ref), rtol=2e-4, atol=2e-4)

    print("KERNEL_OK")
</pallas_src>

<mosaic_0001>
module attributes {stable_mosaic.version = 11 : i64} {
  func.func @kernel(%arg0: i32, %arg1: memref<1x8x256xf32, #tpu.memory_space<vmem>>, %arg2: memref<9x1x256xf32, #tpu.memory_space<vmem>>, %arg3: memref<8x1xf32, #tpu.memory_space<vmem>>, %arg4: memref<8x1xf32, #tpu.memory_space<vmem>>, %arg5: memref<8x72xf32, #tpu.memory_space<vmem>>, %arg6: memref<8x1xf32, #tpu.memory_space<vmem>>, %arg7: memref<8x1xf32, #tpu.memory_space<vmem>>, %arg8: memref<8x72xf32, #tpu.memory_space<vmem>>, %arg9: memref<1x8x256xf32, #tpu.memory_space<vmem>>) attributes {dimension_semantics = [#tpu.dimension_semantics<parallel>], iteration_bounds = array<i64: 2>, scalar_prefetch = 0 : i64, scratch_operands = 0 : i64, tpu.core_type = #tpu.core_type<tc>, window_params = [{transform_indices = @transform_0, window_bounds = array<i64: 1, 8, 256>}, {pipeline_mode = #tpu.pipeline_mode<synchronous>, transform_indices = @transform_1, window_bounds = array<i64: 9, 1, 256>}, {pipeline_mode = #tpu.pipeline_mode<synchronous>, transform_indices = @transform_2, window_bounds = array<i64: 8, 1>}, {pipeline_mode = #tpu.pipeline_mode<synchronous>, transform_indices = @transform_3, window_bounds = array<i64: 8, 1>}, {pipeline_mode = #tpu.pipeline_mode<synchronous>, transform_indices = @transform_4, window_bounds = array<i64: 8, 72>}, {pipeline_mode = #tpu.pipeline_mode<synchronous>, transform_indices = @transform_5, window_bounds = array<i64: 8, 1>}, {pipeline_mode = #tpu.pipeline_mode<synchronous>, transform_indices = @transform_6, window_bounds = array<i64: 8, 1>}, {pipeline_mode = #tpu.pipeline_mode<synchronous>, transform_indices = @transform_7, window_bounds = array<i64: 8, 72>}, {transform_indices = @transform_8, window_bounds = array<i64: 1, 8, 256>}]} {
    %0 = tpu.iota {dimensions = array<i32: 0>} : vector<8x1xi32>
    %c0_i32 = arith.constant 0 : i32
    %1 = vector.broadcast %c0_i32 : i32 to vector<8x1xi32>
    %2 = arith.cmpi sge, %0, %1 : vector<8x1xi32>
    %c2_i32 = arith.constant 2 : i32
    %3 = vector.broadcast %c2_i32 : i32 to vector<8x1xi32>
    %4 = arith.cmpi slt, %0, %3 : vector<8x1xi32>
    %5 = arith.andi %2, %4 : vector<8x1xi1>
    %6 = arith.extui %5 : vector<8x1xi1> to vector<8x1xi32>
    %7 = arith.sitofp %6 : vector<8x1xi32> to vector<8x1xf32>
    %c2_i32_0 = arith.constant 2 : i32
    %8 = vector.broadcast %c2_i32_0 : i32 to vector<8x1xi32>
    %9 = arith.cmpi sge, %0, %8 : vector<8x1xi32>
    %c4_i32 = arith.constant 4 : i32
    %10 = vector.broadcast %c4_i32 : i32 to vector<8x1xi32>
    %11 = arith.cmpi slt, %0, %10 : vector<8x1xi32>
    %12 = arith.andi %9, %11 : vector<8x1xi1>
    %13 = arith.extui %12 : vector<8x1xi1> to vector<8x1xi32>
    %14 = arith.sitofp %13 : vector<8x1xi32> to vector<8x1xf32>
    %c4_i32_1 = arith.constant 4 : i32
    %15 = vector.broadcast %c4_i32_1 : i32 to vector<8x1xi32>
    %16 = arith.cmpi sge, %0, %15 : vector<8x1xi32>
    %c6_i32 = arith.constant 6 : i32
    %17 = vector.broadcast %c6_i32 : i32 to vector<8x1xi32>
    %18 = arith.cmpi slt, %0, %17 : vector<8x1xi32>
    %19 = arith.andi %16, %18 : vector<8x1xi1>
    %20 = arith.extui %19 : vector<8x1xi1> to vector<8x1xi32>
    %21 = arith.sitofp %20 : vector<8x1xi32> to vector<8x1xf32>
    %c6_i32_2 = arith.constant 6 : i32
    %22 = vector.broadcast %c6_i32_2 : i32 to vector<8x1xi32>
    %23 = arith.cmpi sge, %0, %22 : vector<8x1xi32>
    %c8_i32 = arith.constant 8 : i32
    %24 = vector.broadcast %c8_i32 : i32 to vector<8x1xi32>
    %25 = arith.cmpi slt, %0, %24 : vector<8x1xi32>
    %26 = arith.andi %23, %25 : vector<8x1xi1>
    %27 = arith.extui %26 : vector<8x1xi1> to vector<8x1xi32>
    %28 = arith.sitofp %27 : vector<8x1xi32> to vector<8x1xf32>
    %c0 = arith.constant 0 : index
    %c0_3 = arith.constant 0 : index
    %29 = vector.load %arg3[%c0, %c0_3] : memref<8x1xf32, #tpu.memory_space<vmem>>, vector<8x1xf32>
    %c0_4 = arith.constant 0 : index
    %c0_5 = arith.constant 0 : index
    %30 = vector.load %arg4[%c0_4, %c0_5] : memref<8x1xf32, #tpu.memory_space<vmem>>, vector<8x1xf32>
    %c0_6 = arith.constant 0 : index
    %c0_7 = arith.constant 0 : index
    %31 = vector.load %arg6[%c0_6, %c0_7] : memref<8x1xf32, #tpu.memory_space<vmem>>, vector<8x1xf32>
    %c0_8 = arith.constant 0 : index
    %c0_9 = arith.constant 0 : index
    %32 = vector.load %arg7[%c0_8, %c0_9] : memref<8x1xf32, #tpu.memory_space<vmem>>, vector<8x1xf32>
    %c0_10 = arith.constant 0 : index
    %c0_11 = arith.constant 0 : index
    %33 = vector.load %arg5[%c0_10, %c0_11] : memref<8x72xf32, #tpu.memory_space<vmem>>, vector<8x72xf32>
    %c0_12 = arith.constant 0 : index
    %c0_13 = arith.constant 0 : index
    %34 = vector.load %arg8[%c0_12, %c0_13] : memref<8x72xf32, #tpu.memory_space<vmem>>, vector<8x72xf32>
    %c0_14 = arith.constant 0 : index
    %c0_15 = arith.constant 0 : index
    %c0_16 = arith.constant 0 : index
    %35 = vector.load %arg1[%c0_14, %c0_15, %c0_16] : memref<1x8x256xf32, #tpu.memory_space<vmem>>, vector<1x8x256xf32>
    %36 = vector.shape_cast %35 : vector<1x8x256xf32> to vector<8x256xf32>
    %cst = arith.constant dense<0.000000e+00> : vector<8xf32>
    %37 = vector.multi_reduction <add>, %36, %cst [1] : vector<8x256xf32> to vector<8xf32>
    %38 = vector.shape_cast %37 : vector<8xf32> to vector<8x1xf32>
    %39 = arith.mulf %36, %36 : vector<8x256xf32>
    %cst_17 = arith.constant dense<0.000000e+00> : vector<8xf32>
    %40 = vector.multi_reduction <add>, %39, %cst_17 [1] : vector<8x256xf32> to vector<8xf32>
    %41 = vector.shape_cast %40 : vector<8xf32> to vector<8x1xf32>
    %cst_18 = arith.constant 0.000000e+00 : f32
    %42 = vector.broadcast %cst_18 : f32 to vector<8x1xf32>
    %cst_19 = arith.constant 0.000000e+00 : f32
    %43 = vector.broadcast %cst_19 : f32 to vector<8x1xf32>
    %44 = vector.extract_strided_slice %38 {offsets = [0, 0], sizes = [2, 1], strides = [1, 1]} : vector<8x1xf32> to vector<2x1xf32>
    %cst_20 = arith.constant dense<0.000000e+00> : vector<1xf32>
    %45 = vector.multi_reduction <add>, %44, %cst_20 [0] : vector<2x1xf32> to vector<1xf32>
    %46 = vector.shape_cast %45 : vector<1xf32> to vector<1x1xf32>
    %cst_21 = arith.constant 0.001953125 : f32
    %47 = vector.broadcast %cst_21 : f32 to vector<1x1xf32>
    %48 = arith.mulf %46, %47 : vector<1x1xf32>
    %49 = vector.extract_strided_slice %41 {offsets = [0, 0], sizes = [2, 1], strides = [1, 1]} : vector<8x1xf32> to vector<2x1xf32>
    %cst_22 = arith.constant dense<0.000000e+00> : vector<1xf32>
    %50 = vector.multi_reduction <add>, %49, %cst_22 [0] : vector<2x1xf32> to vector<1xf32>
    %51 = vector.shape_cast %50 : vector<1xf32> to vector<1x1xf32>
    %cst_23 = arith.constant 0.001953125 : f32
    %52 = vector.broadcast %cst_23 : f32 to vector<1x1xf32>
    %53 = arith.mulf %51, %52 : vector<1x1xf32>
    %54 = arith.mulf %48, %48 : vector<1x1xf32>
    %55 = arith.subf %53, %54 : vector<1x1xf32>
    %cst_24 = arith.constant 0.000000e+00 : f32
    %56 = vector.broadcast %cst_24 : f32 to vector<1x1xf32>
    %57 = arith.maximumf %55, %56 : vector<1x1xf32>
    %cst_25 = arith.constant 9.99999974E-6 : f32
    %58 = vector.broadcast %cst_25 : f32 to vector<1x1xf32>
    %59 = arith.addf %57, %58 : vector<1x1xf32>
    %60 = math.rsqrt %59 : vector<1x1xf32>
    %61 = vector.broadcast %48 : vector<1x1xf32> to vector<8x1xf32>
    %62 = arith.mulf %7, %61 : vector<8x1xf32>
    %63 = arith.addf %42, %62 : vector<8x1xf32>
    %64 = vector.broadcast %60 : vector<1x1xf32> to vector<8x1xf32>
    %65 = arith.mulf %7, %64 : vector<8x1xf32>
    %66 = arith.addf %43, %65 : vector<8x1xf32>
    %67 = vector.extract_strided_slice %38 {offsets = [2, 0], sizes = [2, 1], strides = [1, 1]} : vector<8x1xf32> to vector<2x1xf32>
    %cst_26 = arith.constant dense<0.000000e+00> : vector<1xf32>
    %68 = vector.multi_reduction <add>, %67, %cst_26 [0] : vector<2x1xf32> to vector<1xf32>
    %69 = vector.shape_cast %68 : vector<1xf32> to vector<1x1xf32>
    %cst_27 = arith.constant 0.001953125 : f32
    %70 = vector.broadcast %cst_27 : f32 to vector<1x1xf32>
    %71 = arith.mulf %69, %70 : vector<1x1xf32>
    %72 = vector.extract_strided_slice %41 {offsets = [2, 0], sizes = [2, 1], strides = [1, 1]} : vector<8x1xf32> to vector<2x1xf32>
    %cst_28 = arith.constant dense<0.000000e+00> : vector<1xf32>
    %73 = vector.multi_reduction <add>, %72, %cst_28 [0] : vector<2x1xf32> to vector<1xf32>
    %74 = vector.shape_cast %73 : vector<1xf32> to vector<1x1xf32>
    %cst_29 = arith.constant 0.001953125 : f32
    %75 = vector.broadcast %cst_29 : f32 to vector<1x1xf32>
    %76 = arith.mulf %74, %75 : vector<1x1xf32>
    %77 = arith.mulf %71, %71 : vector<1x1xf32>
    %78 = arith.subf %76, %77 : vector<1x1xf32>
    %cst_30 = arith.constant 0.000000e+00 : f32
    %79 = vector.broadcast %cst_30 : f32 to vector<1x1xf32>
    %80 = arith.maximumf %78, %79 : vector<1x1xf32>
    %cst_31 = arith.constant 9.99999974E-6 : f32
    %81 = vector.broadcast %cst_31 : f32 to vector<1x1xf32>
    %82 = arith.addf %80, %81 : vector<1x1xf32>
    %83 = math.rsqrt %82 : vector<1x1xf32>
    %84 = vector.broadcast %71 : vector<1x1xf32> to vector<8x1xf32>
    %85 = arith.mulf %14, %84 : vector<8x1xf32>
    %86 = arith.addf %63, %85 : vector<8x1xf32>
    %87 = vector.broadcast %83 : vector<1x1xf32> to vector<8x1xf32>
    %88 = arith.mulf %14, %87 : vector<8x1xf32>
    %89 = arith.addf %66, %88 : vector<8x1xf32>
    %90 = vector.extract_strided_slice %38 {offsets = [4, 0], sizes = [2, 1], strides = [1, 1]} : vector<8x1xf32> to vector<2x1xf32>
    %cst_32 = arith.constant dense<0.000000e+00> : vector<1xf32>
    %91 = vector.multi_reduction <add>, %90, %cst_32 [0] : vector<2x1xf32> to vector<1xf32>
    %92 = vector.shape_cast %91 : vector<1xf32> to vector<1x1xf32>
    %cst_33 = arith.constant 0.001953125 : f32
    %93 = vector.broadcast %cst_33 : f32 to vector<1x1xf32>
    %94 = arith.mulf %92, %93 : vector<1x1xf32>
    %95 = vector.extract_strided_slice %41 {offsets = [4, 0], sizes = [2, 1], strides = [1, 1]} : vector<8x1xf32> to vector<2x1xf32>
    %cst_34 = arith.constant dense<0.000000e+00> : vector<1xf32>
    %96 = vector.multi_reduction <add>, %95, %cst_34 [0] : vector<2x1xf32> to vector<1xf32>
    %97 = vector.shape_cast %96 : vector<1xf32> to vector<1x1xf32>
    %cst_35 = arith.constant 0.001953125 : f32
    %98 = vector.broadcast %cst_35 : f32 to vector<1x1xf32>
    %99 = arith.mulf %97, %98 : vector<1x1xf32>
    %100 = arith.mulf %94, %94 : vector<1x1xf32>
    %101 = arith.subf %99, %100 : vector<1x1xf32>
    %cst_36 = arith.constant 0.000000e+00 : f32
    %102 = vector.broadcast %cst_36 : f32 to vector<1x1xf32>
    %103 = arith.maximumf %101, %102 : vector<1x1xf32>
    %cst_37 = arith.constant 9.99999974E-6 : f32
    %104 = vector.broadcast %cst_37 : f32 to vector<1x1xf32>
    %105 = arith.addf %103, %104 : vector<1x1xf32>
    %106 = math.rsqrt %105 : vector<1x1xf32>
    %107 = vector.broadcast %94 : vector<1x1xf32> to vector<8x1xf32>
    %108 = arith.mulf %21, %107 : vector<8x1xf32>
    %109 = arith.addf %86, %108 : vector<8x1xf32>
    %110 = vector.broadcast %106 : vector<1x1xf32> to vector<8x1xf32>
    %111 = arith.mulf %21, %110 : vector<8x1xf32>
    %112 = arith.addf %89, %111 : vector<8x1xf32>
    %113 = vector.extract_strided_slice %38 {offsets = [6, 0], sizes = [2, 1], strides = [1, 1]} : vector<8x1xf32> to vector<2x1xf32>
    %cst_38 = arith.constant dense<0.000000e+00> : vector<1xf32>
    %114 = vector.multi_reduction <add>, %113, %cst_38 [0] : vector<2x1xf32> to vector<1xf32>
    %115 = vector.shape_cast %114 : vector<1xf32> to vector<1x1xf32>
    %cst_39 = arith.constant 0.001953125 : f32
    %116 = vector.broadcast %cst_39 : f32 to vector<1x1xf32>
    %117 = arith.mulf %115, %116 : vector<1x1xf32>
    %118 = vector.extract_strided_slice %41 {offsets = [6, 0], sizes = [2, 1], strides = [1, 1]} : vector<8x1xf32> to vector<2x1xf32>
    %cst_40 = arith.constant dense<0.000000e+00> : vector<1xf32>
    %119 = vector.multi_reduction <add>, %118, %cst_40 [0] : vector<2x1xf32> to vector<1xf32>
    %120 = vector.shape_cast %119 : vector<1xf32> to vector<1x1xf32>
    %cst_41 = arith.constant 0.001953125 : f32
    %121 = vector.broadcast %cst_41 : f32 to vector<1x1xf32>
    %122 = arith.mulf %120, %121 : vector<1x1xf32>
    %123 = arith.mulf %117, %117 : vector<1x1xf32>
    %124 = arith.subf %122, %123 : vector<1x1xf32>
    %cst_42 = arith.constant 0.000000e+00 : f32
    %125 = vector.broadcast %cst_42 : f32 to vector<1x1xf32>
    %126 = arith.maximumf %124, %125 : vector<1x1xf32>
    %cst_43 = arith.constant 9.99999974E-6 : f32
    %127 = vector.broadcast %cst_43 : f32 to vector<1x1xf32>
    %128 = arith.addf %126, %127 : vector<1x1xf32>
    %129 = math.rsqrt %128 : vector<1x1xf32>
    %130 = vector.broadcast %117 : vector<1x1xf32> to vector<8x1xf32>
    %131 = arith.mulf %28, %130 : vector<8x1xf32>
    %132 = arith.addf %109, %131 : vector<8x1xf32>
    %133 = vector.broadcast %129 : vector<1x1xf32> to vector<8x1xf32>
    %134 = arith.mulf %28, %133 : vector<8x1xf32>
    %135 = arith.addf %112, %134 : vector<8x1xf32>
    %136 = arith.mulf %135, %29 : vector<8x1xf32>
    %137 = arith.mulf %132, %136 : vector<8x1xf32>
    %138 = arith.subf %30, %137 : vector<8x1xf32>
    %139 = vector.broadcast %136 : vector<8x1xf32> to vector<8x256xf32>
    %140 = arith.mulf %36, %139 : vector<8x256xf32>
    %141 = vector.broadcast %138 : vector<8x1xf32> to vector<8x256xf32>
    %142 = arith.addf %140, %141 : vector<8x256xf32>
    %cst_44 = arith.constant 0.000000e+00 : f32
    %143 = vector.broadcast %cst_44 : f32 to vector<8x256xf32>
    %144 = arith.maximumf %142, %143 : vector<8x256xf32>
    %c17_i32 = arith.constant 17 : i32
    %145 = tpu.dynamic_rotate %144 by %c17_i32 dim 1 : vector<8x256xf32>, i32 -> vector<8x256xf32>
    %c0_45 = arith.constant 0 : index
    %c0_46 = arith.constant 0 : index
    %c0_47 = arith.constant 0 : index
    %146 = vector.load %arg2[%c0_45, %c0_46, %c0_47] : memref<9x1x256xf32, #tpu.memory_space<vmem>>, vector<1x1x256xf32>
    %147 = vector.shape_cast %146 : vector<1x1x256xf32> to vector<1x256xf32>
    %148 = vector.broadcast %147 : vector<1x256xf32> to vector<8x256xf32>
    %149 = arith.mulf %145, %148 : vector<8x256xf32>
    %c16_i32 = arith.constant 16 : i32
    %150 = tpu.dynamic_rotate %144 by %c16_i32 dim 1 : vector<8x256xf32>, i32 -> vector<8x256xf32>
    %c1 = arith.constant 1 : index
    %c0_48 = arith.constant 0 : index
    %c0_49 = arith.constant 0 : index
    %151 = vector.load %arg2[%c1, %c0_48, %c0_49] : memref<9x1x256xf32, #tpu.memory_space<vmem>>, vector<1x1x256xf32>
    %152 = vector.shape_cast %151 : vector<1x1x256xf32> to vector<1x256xf32>
    %153 = vector.broadcast %152 : vector<1x256xf32> to vector<8x256xf32>
    %154 = arith.mulf %150, %153 : vector<8x256xf32>
    %c15_i32 = arith.constant 15 : i32
    %155 = tpu.dynamic_rotate %144 by %c15_i32 dim 1 : vector<8x256xf32>, i32 -> vector<8x256xf32>
    %c2 = arith.constant 2 : index
    %c0_50 = arith.constant 0 : index
    %c0_51 = arith.constant 0 : index
    %156 = vector.load %arg2[%c2, %c0_50, %c0_51] : memref<9x1x256xf32, #tpu.memory_space<vmem>>, vector<1x1x256xf32>
    %157 = vector.shape_cast %156 : vector<1x1x256xf32> to vector<1x256xf32>
    %158 = vector.broadcast %157 : vector<1x256xf32> to vector<8x256xf32>
    %159 = arith.mulf %155, %158 : vector<8x256xf32>
    %c1_i32 = arith.constant 1 : i32
    %160 = tpu.dynamic_rotate %144 by %c1_i32 dim 1 : vector<8x256xf32>, i32 -> vector<8x256xf32>
    %c3 = arith.constant 3 : index
    %c0_52 = arith.constant 0 : index
    %c0_53 = arith.constant 0 : index
    %161 = vector.load %arg2[%c3, %c0_52, %c0_53] : memref<9x1x256xf32, #tpu.memory_space<vmem>>, vector<1x1x256xf32>
    %162 = vector.shape_cast %161 : vector<1x1x256xf32> to vector<1x256xf32>
    %163 = vector.broadcast %162 : vector<1x256xf32> to vector<8x256xf32>
    %164 = arith.mulf %160, %163 : vector<8x256xf32>
    %c255_i32 = arith.constant 255 : i32
    %165 = tpu.dynamic_rotate %144 by %c255_i32 dim 1 : vector<8x256xf32>, i32 -> vector<8x256xf32>
    %c5 = arith.constant 5 : index
    %c0_54 = arith.constant 0 : index
    %c0_55 = arith.constant 0 : index
    %166 = vector.load %arg2[%c5, %c0_54, %c0_55] : memref<9x1x256xf32, #tpu.memory_space<vmem>>, vector<1x1x256xf32>
    %167 = vector.shape_cast %166 : vector<1x1x256xf32> to vector<1x256xf32>
    %168 = vector.broadcast %167 : vector<1x256xf32> to vector<8x256xf32>
    %169 = arith.mulf %165, %168 : vector<8x256xf32>
    %c241_i32 = arith.constant 241 : i32
    %170 = tpu.dynamic_rotate %144 by %c241_i32 dim 1 : vector<8x256xf32>, i32 -> vector<8x256xf32>
    %c6 = arith.constant 6 : index
    %c0_56 = arith.constant 0 : index
    %c0_57 = arith.constant 0 : index
    %171 = vector.load %arg2[%c6, %c0_56, %c0_57] : memref<9x1x256xf32, #tpu.memory_space<vmem>>, vector<1x1x256xf32>
    %172 = vector.shape_cast %171 : vector<1x1x256xf32> to vector<1x256xf32>
    %173 = vector.broadcast %172 : vector<1x256xf32> to vector<8x256xf32>
    %174 = arith.mulf %170, %173 : vector<8x256xf32>
    %c240_i32 = arith.constant 240 : i32
    %175 = tpu.dynamic_rotate %144 by %c240_i32 dim 1 : vector<8x256xf32>, i32 -> vector<8x256xf32>
    %c7 = arith.constant 7 : index
    %c0_58 = arith.constant 0 : index
    %c0_59 = arith.constant 0 : index
    %176 = vector.load %arg2[%c7, %c0_58, %c0_59] : memref<9x1x256xf32, #tpu.memory_space<vmem>>, vector<1x1x256xf32>
    %177 = vector.shape_cast %176 : vector<1x1x256xf32> to vector<1x256xf32>
    %178 = vector.broadcast %177 : vector<1x256xf32> to vector<8x256xf32>
    %179 = arith.mulf %175, %178 : vector<8x256xf32>
    %c239_i32 = arith.constant 239 : i32
    %180 = tpu.dynamic_rotate %144 by %c239_i32 dim 1 : vector<8x256xf32>, i32 -> vector<8x256xf32>
    %c8 = arith.constant 8 : index
    %c0_60 = arith.constant 0 : index
    %c0_61 = arith.constant 0 : index
    %181 = vector.load %arg2[%c8, %c0_60, %c0_61] : memref<9x1x256xf32, #tpu.memory_space<vmem>>, vector<1x1x256xf32>
    %182 = vector.shape_cast %181 : vector<1x1x256xf32> to vector<1x256xf32>
    %183 = vector.broadcast %182 : vector<1x256xf32> to vector<8x256xf32>
    %184 = arith.mulf %180, %183 : vector<8x256xf32>
    %185 = tpu.concatenate %149, %154, %159, %164, %144, %169, %174, %179, %184 in 0 : vector<8x256xf32>, vector<8x256xf32>, vector<8x256xf32>, vector<8x256xf32>, vector<8x256xf32>, vector<8x256xf32>, vector<8x256xf32>, vector<8x256xf32>, vector<8x256xf32> -> vector<72x256xf32>
    %cst_62 = arith.constant dense<0.000000e+00> : vector<8x256xf32>
    %186 = tpu.matmul %33, %185, %cst_62 {dimension_numbers = #tpu.dot_dimension_numbers<[1], [0], [0], [1], [0, 0, 1, 1], [], []>} : vector<8x72xf32>, vector<72x256xf32>, vector<8x256xf32> -> vector<8x256xf32>
    %cst_63 = arith.constant dense<0.000000e+00> : vector<8xf32>
    %187 = vector.multi_reduction <add>, %186, %cst_63 [1] : vector<8x256xf32> to vector<8xf32>
    %188 = vector.shape_cast %187 : vector<8xf32> to vector<8x1xf32>
    %189 = arith.mulf %186, %186 : vector<8x256xf32>
    %cst_64 = arith.constant dense<0.000000e+00> : vector<8xf32>
    %190 = vector.multi_reduction <add>, %189, %cst_64 [1] : vector<8x256xf32> to vector<8xf32>
    %191 = vector.shape_cast %190 : vector<8xf32> to vector<8x1xf32>
    %cst_65 = arith.constant 0.000000e+00 : f32
    %192 = vector.broadcast %cst_65 : f32 to vector<8x1xf32>
    %cst_66 = arith.constant 0.000000e+00 : f32
    %193 = vector.broadcast %cst_66 : f32 to vector<8x1xf32>
    %194 = vector.extract_strided_slice %188 {offsets = [0, 0], sizes = [2, 1], strides = [1, 1]} : vector<8x1xf32> to vector<2x1xf32>
    %cst_67 = arith.constant dense<0.000000e+00> : vector<1xf32>
    %195 = vector.multi_reduction <add>, %194, %cst_67 [0] : vector<2x1xf32> to vector<1xf32>
    %196 = vector.shape_cast %195 : vector<1xf32> to vector<1x1xf32>
    %cst_68 = arith.constant 0.001953125 : f32
    %197 = vector.broadcast %cst_68 : f32 to vector<1x1xf32>
    %198 = arith.mulf %196, %197 : vector<1x1xf32>
    %199 = vector.extract_strided_slice %191 {offsets = [0, 0], sizes = [2, 1], strides = [1, 1]} : vector<8x1xf32> to vector<2x1xf32>
    %cst_69 = arith.constant dense<0.000000e+00> : vector<1xf32>
    %200 = vector.multi_reduction <add>, %199, %cst_69 [0] : vector<2x1xf32> to vector<1xf32>
    %201 = vector.shape_cast %200 : vector<1xf32> to vector<1x1xf32>
    %cst_70 = arith.constant 0.001953125 : f32
    %202 = vector.broadcast %cst_70 : f32 to vector<1x1xf32>
    %203 = arith.mulf %201, %202 : vector<1x1xf32>
    %204 = arith.mulf %198, %198 : vector<1x1xf32>
    %205 = arith.subf %203, %204 : vector<1x1xf32>
    %cst_71 = arith.constant 0.000000e+00 : f32
    %206 = vector.broadcast %cst_71 : f32 to vector<1x1xf32>
    %207 = arith.maximumf %205, %206 : vector<1x1xf32>
    %cst_72 = arith.constant 9.99999974E-6 : f32
    %208 = vector.broadcast %cst_72 : f32 to vector<1x1xf32>
    %209 = arith.addf %207, %208 : vector<1x1xf32>
    %210 = math.rsqrt %209 : vector<1x1xf32>
    %211 = vector.broadcast %198 : vector<1x1xf32> to vector<8x1xf32>
    %212 = arith.mulf %7, %211 : vector<8x1xf32>
    %213 = arith.addf %192, %212 : vector<8x1xf32>
    %214 = vector.broadcast %210 : vector<1x1xf32> to vector<8x1xf32>
    %215 = arith.mulf %7, %214 : vector<8x1xf32>
    %216 = arith.addf %193, %215 : vector<8x1xf32>
    %217 = vector.extract_strided_slice %188 {offsets = [2, 0], sizes = [2, 1], strides = [1, 1]} : vector<8x1xf32> to vector<2x1xf32>
    %cst_73 = arith.constant dense<0.000000e+00> : vector<1xf32>
    %218 = vector.multi_reduction <add>, %217, %cst_73 [0] : vector<2x1xf32> to vector<1xf32>
    %219 = vector.shape_cast %218 : vector<1xf32> to vector<1x1xf32>
    %cst_74 = arith.constant 0.001953125 : f32
    %220 = vector.broadcast %cst_74 : f32 to vector<1x1xf32>
    %221 = arith.mulf %219, %220 : vector<1x1xf32>
    %222 = vector.extract_strided_slice %191 {offsets = [2, 0], sizes = [2, 1], strides = [1, 1]} : vector<8x1xf32> to vector<2x1xf32>
    %cst_75 = arith.constant dense<0.000000e+00> : vector<1xf32>
    %223 = vector.multi_reduction <add>, %222, %cst_75 [0] : vector<2x1xf32> to vector<1xf32>
    %224 = vector.shape_cast %223 : vector<1xf32> to vector<1x1xf32>
    %cst_76 = arith.constant 0.001953125 : f32
    %225 = vector.broadcast %cst_76 : f32 to vector<1x1xf32>
    %226 = arith.mulf %224, %225 : vector<1x1xf32>
    %227 = arith.mulf %221, %221 : vector<1x1xf32>
    %228 = arith.subf %226, %227 : vector<1x1xf32>
    %cst_77 = arith.constant 0.000000e+00 : f32
    %229 = vector.broadcast %cst_77 : f32 to vector<1x1xf32>
    %230 = arith.maximumf %228, %229 : vector<1x1xf32>
    %cst_78 = arith.constant 9.99999974E-6 : f32
    %231 = vector.broadcast %cst_78 : f32 to vector<1x1xf32>
    %232 = arith.addf %230, %231 : vector<1x1xf32>
    %233 = math.rsqrt %232 : vector<1x1xf32>
    %234 = vector.broadcast %221 : vector<1x1xf32> to vector<8x1xf32>
    %235 = arith.mulf %14, %234 : vector<8x1xf32>
    %236 = arith.addf %213, %235 : vector<8x1xf32>
    %237 = vector.broadcast %233 : vector<1x1xf32> to vector<8x1xf32>
    %238 = arith.mulf %14, %237 : vector<8x1xf32>
    %239 = arith.addf %216, %238 : vector<8x1xf32>
    %240 = vector.extract_strided_slice %188 {offsets = [4, 0], sizes = [2, 1], strides = [1, 1]} : vector<8x1xf32> to vector<2x1xf32>
    %cst_79 = arith.constant dense<0.000000e+00> : vector<1xf32>
    %241 = vector.multi_reduction <add>, %240, %cst_79 [0] : vector<2x1xf32> to vector<1xf32>
    %242 = vector.shape_cast %241 : vector<1xf32> to vector<1x1xf32>
    %cst_80 = arith.constant 0.001953125 : f32
    %243 = vector.broadcast %cst_80 : f32 to vector<1x1xf32>
    %244 = arith.mulf %242, %243 : vector<1x1xf32>
    %245 = vector.extract_strided_slice %191 {offsets = [4, 0], sizes = [2, 1], strides = [1, 1]} : vector<8x1xf32> to vector<2x1xf32>
    %cst_81 = arith.constant dense<0.000000e+00> : vector<1xf32>
    %246 = vector.multi_reduction <add>, %245, %cst_81 [0] : vector<2x1xf32> to vector<1xf32>
    %247 = vector.shape_cast %246 : vector<1xf32> to vector<1x1xf32>
    %cst_82 = arith.constant 0.001953125 : f32
    %248 = vector.broadcast %cst_82 : f32 to vector<1x1xf32>
    %249 = arith.mulf %247, %248 : vector<1x1xf32>
    %250 = arith.mulf %244, %244 : vector<1x1xf32>
    %251 = arith.subf %249, %250 : vector<1x1xf32>
    %cst_83 = arith.constant 0.000000e+00 : f32
    %252 = vector.broadcast %cst_83 : f32 to vector<1x1xf32>
    %253 = arith.maximumf %251, %252 : vector<1x1xf32>
    %cst_84 = arith.constant 9.99999974E-6 : f32
    %254 = vector.broadcast %cst_84 : f32 to vector<1x1xf32>
    %255 = arith.addf %253, %254 : vector<1x1xf32>
    %256 = math.rsqrt %255 : vector<1x1xf32>
    %257 = vector.broadcast %244 : vector<1x1xf32> to vector<8x1xf32>
    %258 = arith.mulf %21, %257 : vector<8x1xf32>
    %259 = arith.addf %236, %258 : vector<8x1xf32>
    %260 = vector.broadcast %256 : vector<1x1xf32> to vector<8x1xf32>
    %261 = arith.mulf %21, %260 : vector<8x1xf32>
    %262 = arith.addf %239, %261 : vector<8x1xf32>
    %263 = vector.extract_strided_slice %188 {offsets = [6, 0], sizes = [2, 1], strides = [1, 1]} : vector<8x1xf32> to vector<2x1xf32>
    %cst_85 = arith.constant dense<0.000000e+00> : vector<1xf32>
    %264 = vector.multi_reduction <add>, %263, %cst_85 [0] : vector<2x1xf32> to vector<1xf32>
    %265 = vector.shape_cast %264 : vector<1xf32> to vector<1x1xf32>
    %cst_86 = arith.constant 0.001953125 : f32
    %266 = vector.broadcast %cst_86 : f32 to vector<1x1xf32>
    %267 = arith.mulf %265, %266 : vector<1x1xf32>
    %268 = vector.extract_strided_slice %191 {offsets = [6, 0], sizes = [2, 1], strides = [1, 1]} : vector<8x1xf32> to vector<2x1xf32>
    %cst_87 = arith.constant dense<0.000000e+00> : vector<1xf32>
    %269 = vector.multi_reduction <add>, %268, %cst_87 [0] : vector<2x1xf32> to vector<1xf32>
    %270 = vector.shape_cast %269 : vector<1xf32> to vector<1x1xf32>
    %cst_88 = arith.constant 0.001953125 : f32
    %271 = vector.broadcast %cst_88 : f32 to vector<1x1xf32>
    %272 = arith.mulf %270, %271 : vector<1x1xf32>
    %273 = arith.mulf %267, %267 : vector<1x1xf32>
    %274 = arith.subf %272, %273 : vector<1x1xf32>
    %cst_89 = arith.constant 0.000000e+00 : f32
    %275 = vector.broadcast %cst_89 : f32 to vector<1x1xf32>
    %276 = arith.maximumf %274, %275 : vector<1x1xf32>
    %cst_90 = arith.constant 9.99999974E-6 : f32
    %277 = vector.broadcast %cst_90 : f32 to vector<1x1xf32>
    %278 = arith.addf %276, %277 : vector<1x1xf32>
    %279 = math.rsqrt %278 : vector<1x1xf32>
    %280 = vector.broadcast %267 : vector<1x1xf32> to vector<8x1xf32>
    %281 = arith.mulf %28, %280 : vector<8x1xf32>
    %282 = arith.addf %259, %281 : vector<8x1xf32>
    %283 = vector.broadcast %279 : vector<1x1xf32> to vector<8x1xf32>
    %284 = arith.mulf %28, %283 : vector<8x1xf32>
    %285 = arith.addf %262, %284 : vector<8x1xf32>
    %286 = arith.mulf %285, %31 : vector<8x1xf32>
    %287 = arith.mulf %282, %286 : vector<8x1xf32>
    %288 = arith.subf %32, %287 : vector<8x1xf32>
    %289 = vector.broadcast %286 : vector<8x1xf32> to vector<8x256xf32>
    %290 = arith.mulf %186, %289 : vector<8x256xf32>
    %291 = vector.broadcast %288 : vector<8x1xf32> to vector<8x256xf32>
    %292 = arith.addf %290, %291 : vector<8x256xf32>
    %cst_91 = arith.constant 0.000000e+00 : f32
    %293 = vector.broadcast %cst_91 : f32 to vector<8x256xf32>
    %294 = arith.maximumf %292, %293 : vector<8x256xf32>
    %c17_i32_92 = arith.constant 17 : i32
    %295 = tpu.dynamic_rotate %294 by %c17_i32_92 dim 1 : vector<8x256xf32>, i32 -> vector<8x256xf32>
    %c0_93 = arith.constant 0 : index
    %c0_94 = arith.constant 0 : index
    %c0_95 = arith.constant 0 : index
    %296 = vector.load %arg2[%c0_93, %c0_94, %c0_95] : memref<9x1x256xf32, #tpu.memory_space<vmem>>, vector<1x1x256xf32>
    %297 = vector.shape_cast %296 : vector<1x1x256xf32> to vector<1x256xf32>
    %298 = vector.broadcast %297 : vector<1x256xf32> to vector<8x256xf32>
    %299 = arith.mulf %295, %298 : vector<8x256xf32>
    %c16_i32_96 = arith.constant 16 : i32
    %300 = tpu.dynamic_rotate %294 by %c16_i32_96 dim 1 : vector<8x256xf32>, i32 -> vector<8x256xf32>
    %c1_97 = arith.constant 1 : index
    %c0_98 = arith.constant 0 : index
    %c0_99 = arith.constant 0 : index
    %301 = vector.load %arg2[%c1_97, %c0_98, %c0_99] : memref<9x1x256xf32, #tpu.memory_space<vmem>>, vector<1x1x256xf32>
    %302 = vector.shape_cast %301 : vector<1x1x256xf32> to vector<1x256xf32>
    %303 = vector.broadcast %302 : vector<1x256xf32> to vector<8x256xf32>
    %304 = arith.mulf %300, %303 : vector<8x256xf32>
    %c15_i32_100 = arith.constant 15 : i32
    %305 = tpu.dynamic_rotate %294 by %c15_i32_100 dim 1 : vector<8x256xf32>, i32 -> vector<8x256xf32>
    %c2_101 = arith.constant 2 : index
    %c0_102 = arith.constant 0 : index
    %c0_103 = arith.constant 0 : index
    %306 = vector.load %arg2[%c2_101, %c0_102, %c0_103] : memref<9x1x256xf32, #tpu.memory_space<vmem>>, vector<1x1x256xf32>
    %307 = vector.shape_cast %306 : vector<1x1x256xf32> to vector<1x256xf32>
    %308 = vector.broadcast %307 : vector<1x256xf32> to vector<8x256xf32>
    %309 = arith.mulf %305, %308 : vector<8x256xf32>
    %c1_i32_104 = arith.constant 1 : i32
    %310 = tpu.dynamic_rotate %294 by %c1_i32_104 dim 1 : vector<8x256xf32>, i32 -> vector<8x256xf32>
    %c3_105 = arith.constant 3 : index
    %c0_106 = arith.constant 0 : index
    %c0_107 = arith.constant 0 : index
    %311 = vector.load %arg2[%c3_105, %c0_106, %c0_107] : memref<9x1x256xf32, #tpu.memory_space<vmem>>, vector<1x1x256xf32>
    %312 = vector.shape_cast %311 : vector<1x1x256xf32> to vector<1x256xf32>
    %313 = vector.broadcast %312 : vector<1x256xf32> to vector<8x256xf32>
    %314 = arith.mulf %310, %313 : vector<8x256xf32>
    %c255_i32_108 = arith.constant 255 : i32
    %315 = tpu.dynamic_rotate %294 by %c255_i32_108 dim 1 : vector<8x256xf32>, i32 -> vector<8x256xf32>
    %c5_109 = arith.constant 5 : index
    %c0_110 = arith.constant 0 : index
    %c0_111 = arith.constant 0 : index
    %316 = vector.load %arg2[%c5_109, %c0_110, %c0_111] : memref<9x1x256xf32, #tpu.memory_space<vmem>>, vector<1x1x256xf32>
    %317 = vector.shape_cast %316 : vector<1x1x256xf32> to vector<1x256xf32>
    %318 = vector.broadcast %317 : vector<1x256xf32> to vector<8x256xf32>
    %319 = arith.mulf %315, %318 : vector<8x256xf32>
    %c241_i32_112 = arith.constant 241 : i32
    %320 = tpu.dynamic_rotate %294 by %c241_i32_112 dim 1 : vector<8x256xf32>, i32 -> vector<8x256xf32>
    %c6_113 = arith.constant 6 : index
    %c0_114 = arith.constant 0 : index
    %c0_115 = arith.constant 0 : index
    %321 = vector.load %arg2[%c6_113, %c0_114, %c0_115] : memref<9x1x256xf32, #tpu.memory_space<vmem>>, vector<1x1x256xf32>
    %322 = vector.shape_cast %321 : vector<1x1x256xf32> to vector<1x256xf32>
    %323 = vector.broadcast %322 : vector<1x256xf32> to vector<8x256xf32>
    %324 = arith.mulf %320, %323 : vector<8x256xf32>
    %c240_i32_116 = arith.constant 240 : i32
    %325 = tpu.dynamic_rotate %294 by %c240_i32_116 dim 1 : vector<8x256xf32>, i32 -> vector<8x256xf32>
    %c7_117 = arith.constant 7 : index
    %c0_118 = arith.constant 0 : index
    %c0_119 = arith.constant 0 : index
    %326 = vector.load %arg2[%c7_117, %c0_118, %c0_119] : memref<9x1x256xf32, #tpu.memory_space<vmem>>, vector<1x1x256xf32>
    %327 = vector.shape_cast %326 : vector<1x1x256xf32> to vector<1x256xf32>
    %328 = vector.broadcast %327 : vector<1x256xf32> to vector<8x256xf32>
    %329 = arith.mulf %325, %328 : vector<8x256xf32>
    %c239_i32_120 = arith.constant 239 : i32
    %330 = tpu.dynamic_rotate %294 by %c239_i32_120 dim 1 : vector<8x256xf32>, i32 -> vector<8x256xf32>
    %c8_121 = arith.constant 8 : index
    %c0_122 = arith.constant 0 : index
    %c0_123 = arith.constant 0 : index
    %331 = vector.load %arg2[%c8_121, %c0_122, %c0_123] : memref<9x1x256xf32, #tpu.memory_space<vmem>>, vector<1x1x256xf32>
    %332 = vector.shape_cast %331 : vector<1x1x256xf32> to vector<1x256xf32>
    %333 = vector.broadcast %332 : vector<1x256xf32> to vector<8x256xf32>
    %334 = arith.mulf %330, %333 : vector<8x256xf32>
    %335 = tpu.concatenate %299, %304, %309, %314, %294, %319, %324, %329, %334 in 0 : vector<8x256xf32>, vector<8x256xf32>, vector<8x256xf32>, vector<8x256xf32>, vector<8x256xf32>, vector<8x256xf32>, vector<8x256xf32>, vector<8x256xf32>, vector<8x256xf32> -> vector<72x256xf32>
    %cst_124 = arith.constant dense<0.000000e+00> : vector<8x256xf32>
    %336 = tpu.matmul %34, %335, %cst_124 {dimension_numbers = #tpu.dot_dimension_numbers<[1], [0], [0], [1], [0, 0, 1, 1], [], []>} : vector<8x72xf32>, vector<72x256xf32>, vector<8x256xf32> -> vector<8x256xf32>
    %c0_125 = arith.constant 0 : index
    %c0_126 = arith.constant 0 : index
    %c0_127 = arith.constant 0 : index
    %337 = vector.load %arg1[%c0_125, %c0_126, %c0_127] : memref<1x8x256xf32, #tpu.memory_space<vmem>>, vector<1x8x256xf32>
    %338 = vector.shape_cast %337 : vector<1x8x256xf32> to vector<8x256xf32>
    %339 = arith.addf %336, %338 : vector<8x256xf32>
    %c0_128 = arith.constant 0 : index
    %c0_129 = arith.constant 0 : index
    %c0_130 = arith.constant 0 : index
    %340 = vector.load %arg9[%c0_128, %c0_129, %c0_130] : memref<1x8x256xf32, #tpu.memory_space<vmem>>, vector<1x8x256xf32>
    %341 = vector.shape_cast %340 : vector<1x8x256xf32> to vector<8x256xf32>
    %342 = vector.shape_cast %339 : vector<8x256xf32> to vector<1x8x256xf32>
    tpu.vector_store %arg9[%c0_128, %c0_129, %c0_130], %342 {strides = array<i32>} : memref<1x8x256xf32, #tpu.memory_space<vmem>>, vector<1x8x256xf32>,
    return
  }
  func.func @transform_0(%arg0: i32) -> (i32, i32, i32) {
    %c0_i32 = arith.constant 0 : i32
    %c0_i32_0 = arith.constant 0 : i32
    %c0_i32_1 = arith.constant 0 : i32
    return %arg0, %c0_i32, %c0_i32_0 : i32, i32, i32
  }
  func.func @transform_1(%arg0: i32) -> (i32, i32, i32) {
    %c0_i32 = arith.constant 0 : i32
    %c0_i32_0 = arith.constant 0 : i32
    %c0_i32_1 = arith.constant 0 : i32
    %c0_i32_2 = arith.constant 0 : i32
    return %c0_i32, %c0_i32_0, %c0_i32_1 : i32, i32, i32
  }
  func.func @transform_2(%arg0: i32) -> (i32, i32) {
    %c0_i32 = arith.constant 0 : i32
    %c0_i32_0 = arith.constant 0 : i32
    %c0_i32_1 = arith.constant 0 : i32
    return %c0_i32, %c0_i32_0 : i32, i32
  }
  func.func @transform_3(%arg0: i32) -> (i32, i32) {
    %c0_i32 = arith.constant 0 : i32
    %c0_i32_0 = arith.constant 0 : i32
    %c0_i32_1 = arith.constant 0 : i32
    return %c0_i32, %c0_i32_0 : i32, i32
  }
  func.func @transform_4(%arg0: i32) -> (i32, i32) {
    %c0_i32 = arith.constant 0 : i32
    %c0_i32_0 = arith.constant 0 : i32
    %c0_i32_1 = arith.constant 0 : i32
    return %c0_i32, %c0_i32_0 : i32, i32
  }
  func.func @transform_5(%arg0: i32) -> (i32, i32) {
    %c0_i32 = arith.constant 0 : i32
    %c0_i32_0 = arith.constant 0 : i32
    %c0_i32_1 = arith.constant 0 : i32
    return %c0_i32, %c0_i32_0 : i32, i32
  }
  func.func @transform_6(%arg0: i32) -> (i32, i32) {
    %c0_i32 = arith.constant 0 : i32
    %c0_i32_0 = arith.constant 0 : i32
    %c0_i32_1 = arith.constant 0 : i32
    return %c0_i32, %c0_i32_0 : i32, i32
  }
  func.func @transform_7(%arg0: i32) -> (i32, i32) {
    %c0_i32 = arith.constant 0 : i32
    %c0_i32_0 = arith.constant 0 : i32
    %c0_i32_1 = arith.constant 0 : i32
    return %c0_i32, %c0_i32_0 : i32, i32
  }
  func.func @transform_8(%arg0: i32) -> (i32, i32, i32) {
    %c0_i32 = arith.constant 0 : i32
    %c0_i32_0 = arith.constant 0 : i32
    %c0_i32_1 = arith.constant 0 : i32
    return %arg0, %c0_i32, %c0_i32_0 : i32, i32, i32
  }
}

</mosaic_0001>

<llo_original>
// kernel: basic_block_forward.1
$region0: #{basic_block_forward.1}
  #allocation0 [shape = 'u32[]', space=smem, size = 0x4, offset = 0x4, fixed_abs, tag = 'smem constant byte address 0x4 - core index']
  #allocation1 [shape = 'u32[144,128]{1,0:T(1,128)}', space=vmem, size = 0x12000, scoped, tag = 'internal scratch']
  %s0 = inlined_call_operand.vmem [shape: f32[2,8,256], index: 0, kind: input, shape index: {}]
  %s1 = inlined_call_operand.vmem [shape: f32[9,1,256], index: 1, kind: input, shape index: {}]
  %s2 = inlined_call_operand.vmem [shape: f32[8,1], index: 2, kind: input, shape index: {}]
  %s3 = inlined_call_operand.vmem [shape: f32[8,1], index: 3, kind: input, shape index: {}]
  %s4 = inlined_call_operand.vmem [shape: f32[8,72], index: 4, kind: input, shape index: {}]
  %s5 = inlined_call_operand.vmem [shape: f32[8,1], index: 5, kind: input, shape index: {}]
  %s6 = inlined_call_operand.vmem [shape: f32[8,1], index: 6, kind: input, shape index: {}]
  %s7 = inlined_call_operand.vmem [shape: f32[8,72], index: 7, kind: input, shape index: {}]
  %s8 = inlined_call_operand.vmem [shape: f32[2,8,256], index: 8, kind: output, shape index: {}]
  %s9 = sld [smem:[#allocation0]]
  $region65: #{basic_block_forward.1} parent=0
    _
  %s11 = ssub.s32 1, %s9
  %s12 = scalar_select 0, %s11, %s9
  loop: start=0, step=1, limit=4
  $region2: #{basic_block_forward.1} parent=0 // loop_pre_header
    _
  $region3: #{basic_block_forward.1} parent=0 // loop_header
    %s14 = sphi 0, %s18
    %p15 = scmp.ge.s32.totalorder %s14, 4
    %s24 = sphi 0, %s26
    %s27 = sphi 0, %s24
    %s28 = sphi 0, %s27
    %s44 = sphi 0, %s28
    %s48 = sphi 0, %s48
    %s50 = sphi 0, %s48
    %s51 = sphi 0, %s50
    %s65 = sphi 0, %s51
    %s69 = sphi 0, %s69
    %s71 = sphi 0, %s69
    %s72 = sphi 0, %s71
    %s86 = sphi 0, %s72
    %s90 = sphi 0, %s90
    %s92 = sphi 0, %s90
    %s93 = sphi 0, %s92
    %s107 = sphi 0, %s93
    %s111 = sphi 0, %s111
    %s113 = sphi 0, %s111
    %s114 = sphi 0, %s113
    %s128 = sphi 0, %s114
    %s132 = sphi 0, %s132
    %s134 = sphi 0, %s132
    %s135 = sphi 0, %s134
    %s149 = sphi 0, %s135
    %s153 = sphi 0, %s153
    %s155 = sphi 0, %s153
    %s156 = sphi 0, %s155
    %s170 = sphi 0, %s156
    %s174 = sphi 0, %s174
    %s176 = sphi 0, %s174
    %s177 = sphi 0, %s176
    %s191 = sphi 0, %s177
    %s197 = sphi 0, %s199
    %s200 = sphi 0, %s197
    %s201 = sphi 0, %s200
    %s217 = sphi 0, %s201
  $region4: #{basic_block_forward.1} parent=0 // loop_header_branch
    %17 = sbr.rel (%p15) target = $region8
  $region5: #{basic_block_forward.1} parent=0 // loop_body
    %s19 = ssub.s32 %s14, 1
    %s20 = ssub.s32 %s14, 2
    %s21 = sadd.s32 %s14, 1
    %s22 = ssub.s32 %s14, %s21
    %p23 = scmp.eq.s32.totalorder %s22, 0
    %s25 = sadd.s32 %s24, 1
    %s26 = scalar_select %p23, %s24, %s25
    %p29 = pneg %p23
    %p30 = scmp.eq.s32.totalorder %s14, 1
    %p31 = por %p29, %p30
    %p32 = scmp.ne.s32.totalorder %s24, %s27
    %p33 = scmp.eq.s32.totalorder %s14, 0
    %p34 = por %p32, %p33
    %p35 = scmp.ne.s32.totalorder %s24, %s27
    %p36 = scmp.eq.s32.totalorder %s19, 1
    %p37 = por %p35, %p36
    %p38 = scmp.ne.s32.totalorder %s27, %s28
    %p39 = scmp.eq.s32.totalorder %s19, 0
    %p40 = por %p38, %p39
    %p41 = scmp.ne.s32.totalorder %s27, %s28
    %p42 = scmp.eq.s32.totalorder %s20, 1
    %p43 = por %p41, %p42
    %p45 = scmp.ne.s32.totalorder %s28, %s44
    %p46 = scmp.eq.s32.totalorder %s20, 0
    %p47 = por %p45, %p46
    %s49 = sadd.s32 %s48, 1
    %p52 = scmp.eq.s32.totalorder %s14, 1
    %p53 = scmp.ne.s32.totalorder %s48, %s50
    %p54 = scmp.eq.s32.totalorder %s14, 0
    %p55 = por %p53, %p54
    %p56 = scmp.ne.s32.totalorder %s48, %s50
    %p57 = scmp.eq.s32.totalorder %s19, 1
    %p58 = por %p56, %p57
    %p59 = scmp.ne.s32.totalorder %s50, %s51
    %p60 = scmp.eq.s32.totalorder %s19, 0
    %p61 = por %p59, %p60
    %p62 = scmp.ne.s32.totalorder %s50, %s51
    %p63 = scmp.eq.s32.totalorder %s20, 1
    %p64 = por %p62, %p63
    %p66 = scmp.ne.s32.totalorder %s51, %s65
    %p67 = scmp.eq.s32.totalorder %s20, 0
    %p68 = por %p66, %p67
    %s70 = sadd.s32 %s69, 1
    %p73 = scmp.eq.s32.totalorder %s14, 1
    %p74 = scmp.ne.s32.totalorder %s69, %s71
    %p75 = scmp.eq.s32.totalorder %s14, 0
    %p76 = por %p74, %p75
    %p77 = scmp.ne.s32.totalorder %s69, %s71
    %p78 = scmp.eq.s32.totalorder %s19, 1
    %p79 = por %p77, %p78
    %p80 = scmp.ne.s32.totalorder %s71, %s72
    %p81 = scmp.eq.s32.totalorder %s19, 0
    %p82 = por %p80, %p81
    %p83 = scmp.ne.s32.totalorder %s71, %s72
    %p84 = scmp.eq.s32.totalorder %s20, 1
    %p85 = por %p83, %p84
    %p87 = scmp.ne.s32.totalorder %s72, %s86
    %p88 = scmp.eq.s32.totalorder %s20, 0
    %p89 = por %p87, %p88
    %s91 = sadd.s32 %s90, 1
    %p94 = scmp.eq.s32.totalorder %s14, 1
    %p95 = scmp.ne.s32.totalorder %s90, %s92
    %p96 = scmp.eq.s32.totalorder %s14, 0
    %p97 = por %p95, %p96
    %p98 = scmp.ne.s32.totalorder %s90, %s92
    %p99 = scmp.eq.s32.totalorder %s19, 1
    %p100 = por %p98, %p99
    %p101 = scmp.ne.s32.totalorder %s92, %s93
    %p102 = scmp.eq.s32.totalorder %s19, 0
    %p103 = por %p101, %p102
    %p104 = scmp.ne.s32.totalorder %s92, %s93
    %p105 = scmp.eq.s32.totalorder %s20, 1
    %p106 = por %p104, %p105
    %p108 = scmp.ne.s32.totalorder %s93, %s107
    %p109 = scmp.eq.s32.totalorder %s20, 0
    %p110 = por %p108, %p109
    %s112 = sadd.s32 %s111, 1
    %p115 = scmp.eq.s32.totalorder %s14, 1
    %p116 = scmp.ne.s32.totalorder %s111, %s113
    %p117 = scmp.eq.s32.totalorder %s14, 0
    %p118 = por %p116, %p117
    %p119 = scmp.ne.s32.totalorder %s111, %s113
    %p120 = scmp.eq.s32.totalorder %s19, 1
    %p121 = por %p119, %p120
    %p122 = scmp.ne.s32.totalorder %s113, %s114
    %p123 = scmp.eq.s32.totalorder %s19, 0
    %p124 = por %p122, %p123
    %p125 = scmp.ne.s32.totalorder %s113, %s114
    %p126 = scmp.eq.s32.totalorder %s20, 1
    %p127 = por %p125, %p126
    %p129 = scmp.ne.s32.totalorder %s114, %s128
    %p130 = scmp.eq.s32.totalorder %s20, 0
    %p131 = por %p129, %p130
    %s133 = sadd.s32 %s132, 1
    %p136 = scmp.eq.s32.totalorder %s14, 1
    %p137 = scmp.ne.s32.totalorder %s132, %s134
    %p138 = scmp.eq.s32.totalorder %s14, 0
    %p139 = por %p137, %p138
    %p140 = scmp.ne.s32.totalorder %s132, %s134
    %p141 = scmp.eq.s32.totalorder %s19, 1
    %p142 = por %p140, %p141
    %p143 = scmp.ne.s32.totalorder %s134, %s135
    %p144 = scmp.eq.s32.totalorder %s19, 0
    %p145 = por %p143, %p144
    %p146 = scmp.ne.s32.totalorder %s134, %s135
    %p147 = scmp.eq.s32.totalorder %s20, 1
    %p148 = por %p146, %p147
    %p150 = scmp.ne.s32.totalorder %s135, %s149
    %p151 = scmp.eq.s32.totalorder %s20, 0
    %p152 = por %p150, %p151
    %s154 = sadd.s32 %s153, 1
    %p157 = scmp.eq.s32.totalorder %s14, 1
    %p158 = scmp.ne.s32.totalorder %s153, %s155
    %p159 = scmp.eq.s32.totalorder %s14, 0
    %p160 = por %p158, %p159
    %p161 = scmp.ne.s32.totalorder %s153, %s155
    %p162 = scmp.eq.s32.totalorder %s19, 1
    %p163 = por %p161, %p162
    %p164 = scmp.ne.s32.totalorder %s155, %s156
    %p165 = scmp.eq.s32.totalorder %s19, 0
    %p166 = por %p164, %p165
    %p167 = scmp.ne.s32.totalorder %s155, %s156
    %p168 = scmp.eq.s32.totalorder %s20, 1
    %p169 = por %p167, %p168
    %p171 = scmp.ne.s32.totalorder %s156, %s170
    %p172 = scmp.eq.s32.totalorder %s20, 0
    %p173 = por %p171, %p172
    %s175 = sadd.s32 %s174, 1
    %p178 = scmp.eq.s32.totalorder %s14, 1
    %p179 = scmp.ne.s32.totalorder %s174, %s176
    %p180 = scmp.eq.s32.totalorder %s14, 0
    %p181 = por %p179, %p180
    %p182 = scmp.ne.s32.totalorder %s174, %s176
    %p183 = scmp.eq.s32.totalorder %s19, 1
    %p184 = por %p182, %p183
    %p185 = scmp.ne.s32.totalorder %s176, %s177
    %p186 = scmp.eq.s32.totalorder %s19, 0
    %p187 = por %p185, %p186
    %p188 = scmp.ne.s32.totalorder %s176, %s177
    %p189 = scmp.eq.s32.totalorder %s20, 1
    %p190 = por %p188, %p189
    %p192 = scmp.ne.s32.totalorder %s177, %s191
    %p193 = scmp.eq.s32.totalorder %s20, 0
    %p194 = por %p192, %p193
    %s195 = ssub.s32 %s14, %s21
    %p196 = scmp.eq.s32.totalorder %s195, 0
    %s198 = sadd.s32 %s197, 1
    %s199 = scalar_select %p196, %s197, %s198
    %p202 = pneg %p196
    %p203 = scmp.eq.s32.totalorder %s14, 1
    %p204 = por %p202, %p203
    %p205 = scmp.ne.s32.totalorder %s197, %s200
    %p206 = scmp.eq.s32.totalorder %s14, 0
    %p207 = por %p205, %p206
    %p208 = scmp.ne.s32.totalorder %s197, %s200
    %p209 = scmp.eq.s32.totalorder %s19, 1
    %p210 = por %p208, %p209
    %p211 = scmp.ne.s32.totalorder %s200, %s201
    %p212 = scmp.eq.s32.totalorder %s19, 0
    %p213 = por %p211, %p212
    %p214 = scmp.ne.s32.totalorder %s200, %s201
    %p215 = scmp.eq.s32.totalorder %s20, 1
    %p216 = por %p214, %p215
    %p218 = scmp.ne.s32.totalorder %s201, %s217
    %p219 = scmp.eq.s32.totalorder %s20, 0
    %p220 = por %p218, %p219
    %p221 = scmp.le.s32.totalorder 1, %s14
    %p222 = scmp.lt.s32.totalorder %s14, 3
    %p223 = pnand %p221, %p222
    %p224 = pneg %p223
    // Predicated region
    $region9: #{basic_block_forward.1} parent=5 // pred_check
      _
    $region10: #{basic_block_forward.1} parent=5 // pred_check_branch
      %226 = sbr.rel (%p223) target = $region12
    $region11: #{basic_block_forward.1} parent=5 // pred_region
      %s227 = ssub.s32 %s14, 1
      // Predicated region
      $region13: #{basic_block_forward.1} parent=11 // pred_check
        %p228 = pneg %p61
      $region14: #{basic_block_forward.1} parent=11 // pred_check_branch
        %230 = sbr.rel (%p228) target = $region16
      $region15: #{basic_block_forward.1} parent=11 // pred_region
        _
      $region16: #{basic_block_forward.1} parent=11 // pred_fallthru
        _
      // Predicated region
      $region17: #{basic_block_forward.1} parent=11 // pred_check
        %p231 = pneg %p82
      $region18: #{basic_block_forward.1} parent=11 // pred_check_branch
        %233 = sbr.rel (%p231) target = $region20
      $region19: #{basic_block_forward.1} parent=11 // pred_region
        _
      $region20: #{basic_block_forward.1} parent=11 // pred_fallthru
        _
      // Predicated region
      $region21: #{basic_block_forward.1} parent=11 // pred_check
        %p234 = pneg %p103
      $region22: #{basic_block_forward.1} parent=11 // pred_check_branch
        %236 = sbr.rel (%p234) target = $region24
      $region23: #{basic_block_forward.1} parent=11 // pred_region
        _
      $region24: #{basic_block_forward.1} parent=11 // pred_fallthru
        _
      // Predicated region
      $region25: #{basic_block_forward.1} parent=11 // pred_check
        %p237 = pneg %p124
      $region26: #{basic_block_forward.1} parent=11 // pred_check_branch
        %239 = sbr.rel (%p237) target = $region28
      $region27: #{basic_block_forward.1} parent=11 // pred_region
        _
      $region28: #{basic_block_forward.1} parent=11 // pred_fallthru
        _
      // Predicated region
      $region29: #{basic_block_forward.1} parent=11 // pred_check
        %p240 = pneg %p145
      $region30: #{basic_block_forward.1} parent=11 // pred_check_branch
        %242 = sbr.rel (%p240) target = $region32
      $region31: #{basic_block_forward.1} parent=11 // pred_region
        _
      $region32: #{basic_block_forward.1} parent=11 // pred_fallthru
        _
      // Predicated region
      $region33: #{basic_block_forward.1} parent=11 // pred_check
        %p243 = pneg %p166
      $region34: #{basic_block_forward.1} parent=11 // pred_check_branch
        %245 = sbr.rel (%p243) target = $region36
      $region35: #{basic_block_forward.1} parent=11 // pred_region
        _
      $region36: #{basic_block_forward.1} parent=11 // pred_fallthru
        _
      // Predicated region
      $region37: #{basic_block_forward.1} parent=11 // pred_check
        %p246 = pneg %p187
      $region38: #{basic_block_forward.1} parent=11 // pred_check_branch
        %248 = sbr.rel (%p246) target = $region40
      $region39: #{basic_block_forward.1} parent=11 // pred_region
        _
      $region40: #{basic_block_forward.1} parent=11 // pred_fallthru
        _
    $region12: #{basic_block_forward.1} parent=5 // pred_fallthru
      _
    %p249 = scmp.lt.s32.totalorder %s14, 2
    // Predicated region
    $region41: #{basic_block_forward.1} parent=5 // pred_check
      %p250 = pneg %p249
    $region42: #{basic_block_forward.1} parent=5 // pred_check_branch
      %252 = sbr.rel (%p250) target = $region44
    $region43: #{basic_block_forward.1} parent=5 // pred_region
      // Predicated region
      $region45: #{basic_block_forward.1} parent=43 // pred_check
        %p253 = pneg %p34
      $region46: #{basic_block_forward.1} parent=43 // pred_check_branch
        %255 = sbr.rel (%p253) target = $region48
      $region47: #{basic_block_forward.1} parent=43 // pred_region
        %p256 = scmp.lt.s32.totalorder %s14, 1
        %s257 = scalar_select %p256, %s14, 1
        %s258 = smul.addr %s257, 2
        %s259 = smul.addr %s258, 8
        %s260 = scalar_lea.vmem %s0, %s259
      $region48: #{basic_block_forward.1} parent=43 // pred_fallthru
        _
    $region44: #{basic_block_forward.1} parent=5 // pred_fallthru
      _
    %p261 = scmp.le.s32.totalorder 1, %s14
    %p262 = scmp.lt.s32.totalorder %s14, 3
    %p263 = pnand %p261, %p262
    %p264 = pneg %p263
    // Predicated region
    $region49: #{basic_block_forward.1} parent=5 // pred_check
      _
    $region50: #{basic_block_forward.1} parent=5 // pred_check_branch
      %266 = sbr.rel (%p263) target = $region52
    $region51: #{basic_block_forward.1} parent=5 // pred_region
      %s267 = ssub.s32 %s14, 1
      %p268 = scmp.lt.s32.totalorder %s19, 1
      %s269 = scalar_select %p268, %s19, 1
      %s270 = smul.addr %s269, 2
      %s271 = smul.addr %s270, 8
      %s272 = scalar_lea.vmem %s0, %s271
      %p273 = pneg %p40
      %p274 = pneg %p37
      %p275 = pneg %p61
      %p276 = pneg %p58
      %p277 = pneg %p82
      %p278 = pneg %p79
      %p279 = pneg %p103
      %p280 = pneg %p100
      %p281 = pneg %p124
      %p282 = pneg %p121
      %p283 = pneg %p145
      %p284 = pneg %p142
      %p285 = pneg %p166
      %p286 = pneg %p163
      %p287 = pneg %p187
      %p288 = pneg %p184
      %p289 = pneg %p213
      %p290 = pneg %p210
      %p291 = scmp.lt.s32.totalorder %s19, 1
      %s292 = scalar_select %p291, %s19, 1
      %s293 = smul.addr %s292, 2
      %s294 = smul.addr %s293, 8
      %s295 = scalar_lea.vmem %s8, %s294
      %p296 = scmp.lt.s32.totalorder %s19, 1
      %s297 = scalar_select %p296, %s19, 1
      %s298 = smul.addr %s297, 2
      %s299 = smul.addr %s298, 8
      %s300 = scalar_lea.vmem %s0, %s299
      %p301 = scmp.lt.s32.totalorder %s19, 1
      %s302 = scalar_select %p301, %s19, 1
      %s303 = smul.addr %s302, 2
      %s304 = smul.addr %s303, 8
      %s305 = scalar_lea.vmem %s8, %s304
      %v306 = vlaneseq
      %v307 = vshrl.u32 %v306, 7
      %vm308 = vcmp.ge.s32.totalorder %v307, 0
      %vm309 = vcmp.lt.s32.totalorder %v307, 2
      %vm310 = vmand %vm308, %vm309
      %v311 = vsel %vm310, 1, 0
      %v312 = vcvt.s32.f32 %v311
      %vm313 = vcmp.ge.s32.totalorder %v307, 2
      %vm314 = vcmp.lt.s32.totalorder %v307, 4
      %vm315 = vmand %vm313, %vm314
      %v316 = vsel %vm315, 1, 0
      %v317 = vcvt.s32.f32 %v316
      %vm318 = vcmp.ge.s32.totalorder %v307, 4
      %vm319 = vcmp.lt.s32.totalorder %v307, 6
      %vm320 = vmand %vm318, %vm319
      %v321 = vsel %vm320, 1, 0
      %v322 = vcvt.s32.f32 %v321
      %vm323 = vcmp.ge.s32.totalorder %v307, 6
      %vm324 = vcmp.lt.s32.totalorder %v307, 8
      %vm325 = vmand %vm323, %vm324
      %v326 = vsel %vm325, 1, 0
      %v327 = vcvt.s32.f32 %v326
      %v328 = vld [vmem:[%s2] sm:$0xff]
      %v329 = vld [vmem:[%s3] sm:$0xff]
      %v330 = vld [vmem:[%s5] sm:$0xff]
      %v331 = vld [vmem:[%s6] sm:$0xff]
      %v332 = vld [vmem:[%s4] sm:$0xff]
      %v333 = vld [vmem:[%s7] sm:$0xff]
      %v334 = vld [vmem:[%s300] sm:$0xff]
      %v335 = vld [vmem:[%s300 + $0x8] sm:$0xff]
      %v336 = vadd.f32 %v334, %v335
      %337 = vadd.xlane.f32.xlu0 %v336
      %v338 = vpop.xlane.xlu0 %337
      %v339 = vmul.f32 %v334, %v334
      %v340 = vmul.f32 %v335, %v335
      %v341 = vadd.f32 %v339, %v340
      %342 = vadd.xlane.f32.xlu0 %v341
      %v343 = vpop.xlane.xlu0 %342
      %vm344 = vcmask 1041408
      %v345 = vsel %vm344, %v338, 0.0
      %v346 = vrot.slane %v345, 4
      %v347 = vadd.f32 %v345, %v346
      %v348 = vrot.slane %v347, 2
      %v349 = vadd.f32 %v347, %v348
      %v350 = vrot.slane %v349, 1
      %v351 = vadd.f32 %v349, %v350
      %v352 = vmul.f32 %v351, 0.001953125
      %v353 = vsel %vm344, %v343, 0.0
      %v354 = vrot.slane %v353, 4
      %v355 = vadd.f32 %v353, %v354
      %v356 = vrot.slane %v355, 2
      %v357 = vadd.f32 %v355, %v356
      %v358 = vrot.slane %v357, 1
      %v359 = vadd.f32 %v357, %v358
      %v360 = vmul.f32 %v359, 0.001953125
      %v361 = vmul.f32 %v352, %v352
      %v362 = vsub.f32 %v360, %v361
      %v363 = vmax.f32 %v362, 0.0
      %v364 = vadd.f32 %v363, 1e-05
      %v365 = vrsqrt.pop %v364
      %v366 = vmul.f32 %v312, %v352
      %v367 = vadd.f32 %v366, 0.0
      %v368 = vmul.f32 %v312, %v365
      %v369 = vadd.f32 %v368, 0.0
      %v371 = vrot.slane %v338, 2
      %v373 = vsel %vm344, %v371, 0.0
      %v374 = vrot.slane %v373, 4
      %v375 = vadd.f32 %v373, %v374
      %v376 = vrot.slane %v375, 2
      %v377 = vadd.f32 %v375, %v376
      %v378 = vrot.slane %v377, 1
      %v379 = vadd.f32 %v377, %v378
      %v380 = vmul.f32 %v379, 0.001953125
      %v382 = vrot.slane %v343, 2
      %v384 = vsel %vm344, %v382, 0.0
      %v385 = vrot.slane %v384, 4
      %v386 = vadd.f32 %v384, %v385
      %v387 = vrot.slane %v386, 2
      %v388 = vadd.f32 %v386, %v387
      %v389 = vrot.slane %v388, 1
      %v390 = vadd.f32 %v388, %v389
      %v391 = vmul.f32 %v390, 0.001953125
      %v392 = vmul.f32 %v380, %v380
      %v393 = vsub.f32 %v391, %v392
      %v394 = vmax.f32 %v393, 0.0
      %v395 = vadd.f32 %v394, 1e-05
      %v396 = vrsqrt.pop %v395
      %v397 = vmul.f32 %v317, %v380
      %v398 = vadd.f32 %v367, %v397
      %v399 = vmul.f32 %v317, %v396
      %v400 = vadd.f32 %v369, %v399
      %v401 = vrot.slane %v338, 4
      %v403 = vsel %vm344, %v401, 0.0
      %v404 = vrot.slane %v403, 4
      %v405 = vadd.f32 %v403, %v404
      %v406 = vrot.slane %v405, 2
      %v407 = vadd.f32 %v405, %v406
      %v408 = vrot.slane %v407, 1
      %v409 = vadd.f32 %v407, %v408
      %v410 = vmul.f32 %v409, 0.001953125
      %v411 = vrot.slane %v343, 4
      %v413 = vsel %vm344, %v411, 0.0
      %v414 = vrot.slane %v413, 4
      %v415 = vadd.f32 %v413, %v414
      %v416 = vrot.slane %v415, 2
      %v417 = vadd.f32 %v415, %v416
      %v418 = vrot.slane %v417, 1
      %v419 = vadd.f32 %v417, %v418
      %v420 = vmul.f32 %v419, 0.001953125
      %v421 = vmul.f32 %v410, %v410
      %v422 = vsub.f32 %v420, %v421
      %v423 = vmax.f32 %v422, 0.0
      %v424 = vadd.f32 %v423, 1e-05
      %v425 = vrsqrt.pop %v424
      %v426 = vmul.f32 %v322, %v410
      %v427 = vadd.f32 %v398, %v426
      %v428 = vmul.f32 %v322, %v425
      %v429 = vadd.f32 %v400, %v428
      %v430 = vrot.slane %v338, 6
      %v432 = vsel %vm344, %v430, 0.0
      %v433 = vrot.slane %v432, 4
      %v434 = vadd.f32 %v432, %v433
      %v435 = vrot.slane %v434, 2
      %v436 = vadd.f32 %v434, %v435
      %v437 = vrot.slane %v436, 1
      %v438 = vadd.f32 %v436, %v437
      %v439 = vmul.f32 %v438, 0.001953125
      %v440 = vrot.slane %v343, 6
      %v442 = vsel %vm344, %v440, 0.0
      %v443 = vrot.slane %v442, 4
      %v444 = vadd.f32 %v442, %v443
      %v445 = vrot.slane %v444, 2
      %v446 = vadd.f32 %v444, %v445
      %v447 = vrot.slane %v446, 1
      %v448 = vadd.f32 %v446, %v447
      %v449 = vmul.f32 %v448, 0.001953125
      %v450 = vmul.f32 %v439, %v439
      %v451 = vsub.f32 %v449, %v450
      %v452 = vmax.f32 %v451, 0.0
      %v453 = vadd.f32 %v452, 1e-05
      %v454 = vrsqrt.pop %v453
      %v455 = vmul.f32 %v327, %v439
      %v456 = vadd.f32 %v427, %v455
      %v457 = vmul.f32 %v327, %v454
      %v458 = vadd.f32 %v429, %v457
      %v459 = vmul.f32 %v458, %v328
      %v460 = vmul.f32 %v456, %v459
      %v461 = vsub.f32 %v329, %v460
      %463 = vset.pattern.permute.xlu0 0
      %464 = vperm.xlu0 %463, %v459
      %v465 = vpop.permute.xlu0 %464
      %v467 = vmul.f32 %v334, %v465
      %v468 = vmul.f32 %v335, %v465
      %470 = vset.pattern.permute.xlu0 0
      %471 = vperm.xlu0 %470, %v461
      %v472 = vpop.permute.xlu0 %471
      %v474 = vadd.f32 %v467, %v472
      %v475 = vadd.f32 %v468, %v472
      %v476 = vmax.f32 %v474, 0.0
      %v477 = vmax.f32 %v475, 0.0
      %478 = vrot.lane.b32.xlu0 %v476, 17
      %v479 = vpop.permute.xlu0 %478
      %480 = vrot.lane.b32.xlu0 %v477, 17
      %v481 = vpop.permute.xlu0 %480
      %v482 = vlaneseq
      %v483 = vand.u32 %v482, 127
      %vm484 = vcmp.lt.s32.totalorder %v483, 17
      %v485 = vsel %vm484, %v479, %v481
      %v486 = vsel %vm484, %v481, %v479
      %v487 = vld [vmem:[%s1] sm:$0x3]
      %v489 = vlaneseq
      %v490 = vshrl.u32 %v489, 7
      %v491 = vsub.s32 0, %v490
      %v492 = vrot.slane %v487, %v491
      %v493 = vlaneseq
      %v494 = vshrl.u32 %v493, 7
      %v495 = vsub.s32 1, %v494
      %v496 = vrot.slane %v487, %v495
      %v499 = vmul.f32 %v486, %v492
      %v500 = vmul.f32 %v485, %v496
      %501 = vrot.lane.b32.xlu0 %v476, 16
      %v502 = vpop.permute.xlu0 %501
      %503 = vrot.lane.b32.xlu0 %v477, 16
      %v504 = vpop.permute.xlu0 %503
      %vm505 = vcmp.lt.s32.totalorder %v483, 16
      %v506 = vsel %vm505, %v502, %v504
      %v507 = vsel %vm505, %v504, %v502
      %s508 = scalar_lea.vmem %s1, 2
      %v509 = vld [vmem:[%s508] sm:$0x3]
      %v511 = vlaneseq
      %v512 = vshrl.u32 %v511, 7
      %v513 = vsub.s32 0, %v512
      %v514 = vrot.slane %v509, %v513
      %v515 = vlaneseq
      %v516 = vshrl.u32 %v515, 7
      %v517 = vsub.s32 1, %v516
      %v518 = vrot.slane %v509, %v517
      %v521 = vmul.f32 %v507, %v514
      %v522 = vmul.f32 %v506, %v518
      %523 = vrot.lane.b32.xlu0 %v476, 15
      %v524 = vpop.permute.xlu0 %523
      %525 = vrot.lane.b32.xlu0 %v477, 15
      %v526 = vpop.permute.xlu0 %525
      %vm527 = vcmp.lt.s32.totalorder %v483, 15
      %v528 = vsel %vm527, %v524, %v526
      %v529 = vsel %vm527, %v526, %v524
      %s530 = scalar_lea.vmem %s1, 4
      %v531 = vld [vmem:[%s530] sm:$0x3]
      %v533 = vlaneseq
      %v534 = vshrl.u32 %v533, 7
      %v535 = vsub.s32 0, %v534
      %v536 = vrot.slane %v531, %v535
      %v537 = vlaneseq
      %v538 = vshrl.u32 %v537, 7
      %v539 = vsub.s32 1, %v538
      %v540 = vrot.slane %v531, %v539
      %v543 = vmul.f32 %v529, %v536
      %v544 = vmul.f32 %v528, %v540
      %545 = vrot.lane.b32.xlu0 %v476, 1
      %v546 = vpop.permute.xlu0 %545
      %547 = vrot.lane.b32.xlu0 %v477, 1
      %v548 = vpop.permute.xlu0 %547
      %vm549 = vcmp.lt.s32.totalorder %v483, 1
      %v550 = vsel %vm549, %v546, %v548
      %v551 = vsel %vm549, %v548, %v546
      %s552 = scalar_lea.vmem %s1, 6
      %v553 = vld [vmem:[%s552] sm:$0x3]
      %v555 = vlaneseq
      %v556 = vshrl.u32 %v555, 7
      %v557 = vsub.s32 0, %v556
      %v558 = vrot.slane %v553, %v557
      %v559 = vlaneseq
      %v560 = vshrl.u32 %v559, 7
      %v561 = vsub.s32 1, %v560
      %v562 = vrot.slane %v553, %v561
      %v565 = vmul.f32 %v551, %v558
      %v566 = vmul.f32 %v550, %v562
      %567 = vrot.lane.b32.xlu0 %v476, 127
      %v568 = vpop.permute.xlu0 %567
      %569 = vrot.lane.b32.xlu0 %v477, 127
      %v570 = vpop.permute.xlu0 %569
      %vm571 = vcmp.lt.s32.totalorder %v483, 127
      %v572 = vsel %vm571, %v568, %v570
      %v573 = vsel %vm571, %v570, %v568
      %s574 = scalar_lea.vmem %s1, 10
      %v575 = vld [vmem:[%s574] sm:$0x3]
      %v577 = vlaneseq
      %v578 = vshrl.u32 %v577, 7
      %v579 = vsub.s32 0, %v578
      %v580 = vrot.slane %v575, %v579
      %v581 = vlaneseq
      %v582 = vshrl.u32 %v581, 7
      %v583 = vsub.s32 1, %v582
      %v584 = vrot.slane %v575, %v583
      %v587 = vmul.f32 %v572, %v580
      %v588 = vmul.f32 %v573, %v584
      %589 = vrot.lane.b32.xlu0 %v476, 113
      %v590 = vpop.permute.xlu0 %589
      %591 = vrot.lane.b32.xlu0 %v477, 113
      %v592 = vpop.permute.xlu0 %591
      %vm593 = vcmp.lt.s32.totalorder %v483, 113
      %v594 = vsel %vm593, %v590, %v592
      %v595 = vsel %vm593, %v592, %v590
      %s596 = scalar_lea.vmem %s1, 12
      %v597 = vld [vmem:[%s596] sm:$0x3]
      %v599 = vlaneseq
      %v600 = vshrl.u32 %v599, 7
      %v601 = vsub.s32 0, %v600
      %v602 = vrot.slane %v597, %v601
      %v603 = vlaneseq
      %v604 = vshrl.u32 %v603, 7
      %v605 = vsub.s32 1, %v604
      %v606 = vrot.slane %v597, %v605
      %v609 = vmul.f32 %v594, %v602
      %v610 = vmul.f32 %v595, %v606
      %611 = vrot.lane.b32.xlu0 %v476, 112
      %v612 = vpop.permute.xlu0 %611
      %613 = vrot.lane.b32.xlu0 %v477, 112
      %v614 = vpop.permute.xlu0 %613
      %vm615 = vcmp.lt.s32.totalorder %v483, 112
      %v616 = vsel %vm615, %v612, %v614
      %v617 = vsel %vm615, %v614, %v612
      %s618 = scalar_lea.vmem %s1, 14
      %v619 = vld [vmem:[%s618] sm:$0x3]
      %v621 = vlaneseq
      %v622 = vshrl.u32 %v621, 7
      %v623 = vsub.s32 0, %v622
      %v624 = vrot.slane %v619, %v623
      %v625 = vlaneseq
      %v626 = vshrl.u32 %v625, 7
      %v627 = vsub.s32 1, %v626
      %v628 = vrot.slane %v619, %v627
      %v631 = vmul.f32 %v616, %v624
      %v632 = vmul.f32 %v617, %v628
      %633 = vrot.lane.b32.xlu0 %v476, 111
      %v634 = vpop.permute.xlu0 %633
      %635 = vrot.lane.b32.xlu0 %v477, 111
      %v636 = vpop.permute.xlu0 %635
      %vm637 = vcmp.lt.s32.totalorder %v483, 111
      %v638 = vsel %vm637, %v634, %v636
      %v639 = vsel %vm637, %v636, %v634
      %s640 = scalar_lea.vmem %s1, 16
      %v641 = vld [vmem:[%s640] sm:$0x3]
      %v643 = vlaneseq
      %v644 = vshrl.u32 %v643, 7
      %v645 = vsub.s32 0, %v644
      %v646 = vrot.slane %v641, %v645
      %v647 = vlaneseq
      %v648 = vshrl.u32 %v647, 7
      %v649 = vsub.s32 1, %v648
      %v650 = vrot.slane %v641, %v649
      %v653 = vmul.f32 %v638, %v646
      %v654 = vmul.f32 %v639, %v650
      %vm655 = vcmask 588800
      %v657 = vsel %vm655, %v332, 0
      %659 = vmatprep.subr.mxu0 %v500
      %660 = vmatpush1.msra.mxu0 %v499
      %661 = vmatprep.subr.mxu0 %v522
      %662 = vmatpush1.msra.mxu0 %v521
      %663 = vmatprep.subr.mxu0 %v544
      %664 = vmatpush1.msra.mxu0 %v543
      %665 = vmatprep.subr.mxu0 %v566
      %666 = vmatpush1.msra.mxu0 %v565
      %667 = vmatprep.subr.mxu0 %v477
      %668 = vmatpush1.msra.mxu0 %v476
      %669 = vmatprep.subr.mxu0 %v588
      %670 = vmatpush1.msra.mxu0 %v587
      %671 = vmatprep.subr.mxu0 %v610
      %672 = vmatpush1.msra.mxu0 %v609
      %673 = vmatprep.subr.mxu0 %v632
      %674 = vmatpush1.msra.mxu0 %v631
      %675 = vmatprep.subr.mxu0 %v654
      %676 = vmatpush1.msra.mxu0 %v653
      %677 = vmatprep.subr.mxu0 0.0
      %678 = vmatpush1.msra.mxu0 0.0
      %679 = vmatprep.subr.mxu0 0.0
      %680 = vmatpush1.msra.mxu0 0.0
      %681 = vmatprep.subr.mxu0 0.0
      %682 = vmatpush1.msra.mxu0 0.0
      %683 = vmatprep.subr.mxu0 0.0
      %684 = vmatpush1.msra.mxu0 0.0
      %685 = vmatprep.subr.mxu0 0.0
      %686 = vmatpush1.msra.mxu0 0.0
      %687 = vmatprep.subr.mxu0 0.0
      %688 = vmatpush1.msra.mxu0 0.0
      %689 = vmatprep.subr.mxu0 0.0
      %690 = vmatpush1.msra.mxu0 0.0
      %691 = vmatprep.subr.mxu0 0.0
      %692 = vmatpush1.msra.mxu0 0.0
      %693 = vmatprep.subr.mxu0 0.0
      %694 = vmatpush1.msra.mxu0 0.0
      %695 = vmatprep.subr.mxu0 0.0
      %696 = vmatpush1.msra.mxu0 0.0
      %697 = vmatprep.subr.mxu0 0.0
      %698 = vmatpush1.msra.mxu0 0.0
      %699 = vmatprep.subr.mxu0 0.0
      %700 = vmatpush1.msra.mxu0 0.0
      %701 = vmatprep.subr.mxu0 0.0
      %702 = vmatpush1.msra.mxu0 0.0
      %703 = vmatprep.subr.mxu0 0.0
      %704 = vmatpush1.msra.mxu0 0.0
      %705 = vmatprep.subr.mxu0 0.0
      %706 = vmatpush1.msra.mxu0 0.0
      %707 = vmatprep.subr.mxu0 0.0
      %708 = vmatpush1.msra.mxu0 0.0
      %709 = vmatprep.subr.mxu0 0.0
      %710 = vmatpush1.msra.mxu0 0.0
      %711 = vmatprep.subr.mxu0 0.0
      %712 = vmatpush1.msra.mxu0 0.0
      %713 = vmatprep.subr.mxu0 0.0
      %714 = vmatpush1.msra.mxu0 0.0
      %715 = vmatprep.subr.mxu0 0.0
      %716 = vmatpush1.msra.mxu0 0.0
      %717 = vmatprep.subr.mxu0 0.0
      %718 = vmatpush1.msra.mxu0 0.0
      %719 = vmatprep.subr.mxu0 0.0
      %720 = vmatpush1.msra.mxu0 0.0
      %721 = vmatprep.subr.mxu0 0.0
      %722 = vmatpush1.msra.mxu0 0.0
      %723 = vmatprep.mubr.f32.mxu0 0.0
      %724 = vmatmul.mubr.f32.gmra.mrb[0].mxu0 %v657
      %v725 = vpop.f32.mrb[0].mxu0
      %v726 = vadd.f32 0.0, %v725
      %v727 = vpop.f32.mrb[0].mxu0
      %v728 = vadd.f32 0.0, %v727
      %729 = vdwg.mxu0
      %v730 = vadd.f32 %v726, %v728
      %731 = vadd.xlane.f32.xlu0 %v730
      %v732 = vpop.xlane.xlu0 %731
      %v733 = vmul.f32 %v726, %v726
      %v734 = vmul.f32 %v728, %v728
      %v735 = vadd.f32 %v733, %v734
      %736 = vadd.xlane.f32.xlu0 %v735
      %v737 = vpop.xlane.xlu0 %736
      %v738 = vsel %vm344, %v732, 0.0
      %v739 = vrot.slane %v738, 4
      %v740 = vadd.f32 %v738, %v739
      %v741 = vrot.slane %v740, 2
      %v742 = vadd.f32 %v740, %v741
      %v743 = vrot.slane %v742, 1
      %v744 = vadd.f32 %v742, %v743
      %v745 = vmul.f32 %v744, 0.001953125
      %v746 = vsel %vm344, %v737, 0.0
      %v747 = vrot.slane %v746, 4
      %v748 = vadd.f32 %v746, %v747
      %v749 = vrot.slane %v748, 2
      %v750 = vadd.f32 %v748, %v749
      %v751 = vrot.slane %v750, 1
      %v752 = vadd.f32 %v750, %v751
      %v753 = vmul.f32 %v752, 0.001953125
      %v754 = vmul.f32 %v745, %v745
      %v755 = vsub.f32 %v753, %v754
      %v756 = vmax.f32 %v755, 0.0
      %v757 = vadd.f32 %v756, 1e-05
      %v758 = vrsqrt.pop %v757
      %v759 = vmul.f32 %v312, %v745
      %v760 = vadd.f32 %v759, 0.0
      %v761 = vmul.f32 %v312, %v758
      %v762 = vadd.f32 %v761, 0.0
      %v764 = vrot.slane %v732, 2
      %v766 = vsel %vm344, %v764, 0.0
      %v767 = vrot.slane %v766, 4
      %v768 = vadd.f32 %v766, %v767
      %v769 = vrot.slane %v768, 2
      %v770 = vadd.f32 %v768, %v769
      %v771 = vrot.slane %v770, 1
      %v772 = vadd.f32 %v770, %v771
      %v773 = vmul.f32 %v772, 0.001953125
      %v775 = vrot.slane %v737, 2
      %v777 = vsel %vm344, %v775, 0.0
      %v778 = vrot.slane %v777, 4
      %v779 = vadd.f32 %v777, %v778
      %v780 = vrot.slane %v779, 2
      %v781 = vadd.f32 %v779, %v780
      %v782 = vrot.slane %v781, 1
      %v783 = vadd.f32 %v781, %v782
      %v784 = vmul.f32 %v783, 0.001953125
      %v785 = vmul.f32 %v773, %v773
      %v786 = vsub.f32 %v784, %v785
      %v787 = vmax.f32 %v786, 0.0
      %v788 = vadd.f32 %v787, 1e-05
      %v789 = vrsqrt.pop %v788
      %v790 = vmul.f32 %v317, %v773
      %v791 = vadd.f32 %v760, %v790
      %v792 = vmul.f32 %v317, %v789
      %v793 = vadd.f32 %v762, %v792
      %v794 = vrot.slane %v732, 4
      %v796 = vsel %vm344, %v794, 0.0
      %v797 = vrot.slane %v796, 4
      %v798 = vadd.f32 %v796, %v797
      %v799 = vrot.slane %v798, 2
      %v800 = vadd.f32 %v798, %v799
      %v801 = vrot.slane %v800, 1
      %v802 = vadd.f32 %v800, %v801
      %v803 = vmul.f32 %v802, 0.001953125
      %v804 = vrot.slane %v737, 4
      %v806 = vsel %vm344, %v804, 0.0
      %v807 = vrot.slane %v806, 4
      %v808 = vadd.f32 %v806, %v807
      %v809 = vrot.slane %v808, 2
      %v810 = vadd.f32 %v808, %v809
      %v811 = vrot.slane %v810, 1
      %v812 = vadd.f32 %v810, %v811
      %v813 = vmul.f32 %v812, 0.001953125
      %v814 = vmul.f32 %v803, %v803
      %v815 = vsub.f32 %v813, %v814
      %v816 = vmax.f32 %v815, 0.0
      %v817 = vadd.f32 %v816, 1e-05
      %v818 = vrsqrt.pop %v817
      %v819 = vmul.f32 %v322, %v803
      %v820 = vadd.f32 %v791, %v819
      %v821 = vmul.f32 %v322, %v818
      %v822 = vadd.f32 %v793, %v821
      %v823 = vrot.slane %v732, 6
      %v825 = vsel %vm344, %v823, 0.0
      %v826 = vrot.slane %v825, 4
      %v827 = vadd.f32 %v825, %v826
      %v828 = vrot.slane %v827, 2
      %v829 = vadd.f32 %v827, %v828
      %v830 = vrot.slane %v829, 1
      %v831 = vadd.f32 %v829, %v830
      %v832 = vmul.f32 %v831, 0.001953125
      %v833 = vrot.slane %v737, 6
      %v835 = vsel %vm344, %v833, 0.0
      %v836 = vrot.slane %v835, 4
      %v837 = vadd.f32 %v835, %v836
      %v838 = vrot.slane %v837, 2
      %v839 = vadd.f32 %v837, %v838
      %v840 = vrot.slane %v839, 1
      %v841 = vadd.f32 %v839, %v840
      %v842 = vmul.f32 %v841, 0.001953125
      %v843 = vmul.f32 %v832, %v832
      %v844 = vsub.f32 %v842, %v843
      %v845 = vmax.f32 %v844, 0.0
      %v846 = vadd.f32 %v845, 1e-05
      %v847 = vrsqrt.pop %v846
      %v848 = vmul.f32 %v327, %v832
      %v849 = vadd.f32 %v820, %v848
      %v850 = vmul.f32 %v327, %v847
      %v851 = vadd.f32 %v822, %v850
      %v852 = vmul.f32 %v851, %v330
      %v853 = vmul.f32 %v849, %v852
      %v854 = vsub.f32 %v331, %v853
      %856 = vset.pattern.permute.xlu0 0
      %857 = vperm.xlu0 %856, %v852
      %v858 = vpop.permute.xlu0 %857
      %v860 = vmul.f32 %v726, %v858
      %v861 = vmul.f32 %v728, %v858
      %863 = vset.pattern.permute.xlu0 0
      %864 = vperm.xlu0 %863, %v854
      %v865 = vpop.permute.xlu0 %864
      %v867 = vadd.f32 %v860, %v865
      %v868 = vadd.f32 %v861, %v865
      %v869 = vmax.f32 %v867, 0.0
      %v870 = vmax.f32 %v868, 0.0
      %871 = vrot.lane.b32.xlu0 %v869, 17
      %v872 = vpop.permute.xlu0 %871
      %873 = vrot.lane.b32.xlu0 %v870, 17
      %v874 = vpop.permute.xlu0 %873
      %v875 = vsel %vm484, %v872, %v874
      %v876 = vsel %vm484, %v874, %v872
      %v877 = vmul.f32 %v876, %v492
      %v878 = vmul.f32 %v875, %v496
      %879 = vrot.lane.b32.xlu0 %v869, 16
      %v880 = vpop.permute.xlu0 %879
      %881 = vrot.lane.b32.xlu0 %v870, 16
      %v882 = vpop.permute.xlu0 %881
      %v883 = vsel %vm505, %v880, %v882
      %v884 = vsel %vm505, %v882, %v880
      %v885 = vmul.f32 %v884, %v514
      %v886 = vmul.f32 %v883, %v518
      %887 = vrot.lane.b32.xlu0 %v869, 15
      %v888 = vpop.permute.xlu0 %887
      %889 = vrot.lane.b32.xlu0 %v870, 15
      %v890 = vpop.permute.xlu0 %889
      %v891 = vsel %vm527, %v888, %v890
      %v892 = vsel %vm527, %v890, %v888
      %v893 = vmul.f32 %v892, %v536
      %v894 = vmul.f32 %v891, %v540
      %895 = vrot.lane.b32.xlu0 %v869, 1
      %v896 = vpop.permute.xlu0 %895
      %897 = vrot.lane.b32.xlu0 %v870, 1
      %v898 = vpop.permute.xlu0 %897
      %v899 = vsel %vm549, %v896, %v898
      %v900 = vsel %vm549, %v898, %v896
      %v901 = vmul.f32 %v900, %v558
      %v902 = vmul.f32 %v899, %v562
      %903 = vrot.lane.b32.xlu0 %v869, 127
      %v904 = vpop.permute.xlu0 %903
      %905 = vrot.lane.b32.xlu0 %v870, 127
      %v906 = vpop.permute.xlu0 %905
      %v907 = vsel %vm571, %v904, %v906
      %v908 = vsel %vm571, %v906, %v904
      %v909 = vmul.f32 %v907, %v580
      %v910 = vmul.f32 %v908, %v584
      %911 = vrot.lane.b32.xlu0 %v869, 113
      %v912 = vpop.permute.xlu0 %911
      %913 = vrot.lane.b32.xlu0 %v870, 113
      %v914 = vpop.permute.xlu0 %913
      %v915 = vsel %vm593, %v912, %v914
      %v916 = vsel %vm593, %v914, %v912
      %v917 = vmul.f32 %v915, %v602
      %v918 = vmul.f32 %v916, %v606
      %919 = vrot.lane.b32.xlu0 %v869, 112
      %v920 = vpop.permute.xlu0 %919
      %921 = vrot.lane.b32.xlu0 %v870, 112
      %v922 = vpop.permute.xlu0 %921
      %v923 = vsel %vm615, %v920, %v922
      %v924 = vsel %vm615, %v922, %v920
      %v925 = vmul.f32 %v923, %v624
      %v926 = vmul.f32 %v924, %v628
      %927 = vrot.lane.b32.xlu0 %v869, 111
      %v928 = vpop.permute.xlu0 %927
      %929 = vrot.lane.b32.xlu0 %v870, 111
      %v930 = vpop.permute.xlu0 %929
      %v931 = vsel %vm637, %v928, %v930
      %v932 = vsel %vm637, %v930, %v928
      %v933 = vmul.f32 %v931, %v646
      %v934 = vmul.f32 %v932, %v650
      %v936 = vsel %vm655, %v333, 0
      %938 = vmatprep.subr.mxu0 %v878
      %939 = vmatpush1.msra.mxu0 %v877
      %940 = vmatprep.subr.mxu0 %v886
      %941 = vmatpush1.msra.mxu0 %v885
      %942 = vmatprep.subr.mxu0 %v894
      %943 = vmatpush1.msra.mxu0 %v893
      %944 = vmatprep.subr.mxu0 %v902
      %945 = vmatpush1.msra.mxu0 %v901
      %946 = vmatprep.subr.mxu0 %v870
      %947 = vmatpush1.msra.mxu0 %v869
      %948 = vmatprep.subr.mxu0 %v910
      %949 = vmatpush1.msra.mxu0 %v909
      %950 = vmatprep.subr.mxu0 %v918
      %951 = vmatpush1.msra.mxu0 %v917
      %952 = vmatprep.subr.mxu0 %v926
      %953 = vmatpush1.msra.mxu0 %v925
      %954 = vmatprep.subr.mxu0 %v934
      %955 = vmatpush1.msra.mxu0 %v933
      %956 = vmatprep.subr.mxu0 0.0
      %957 = vmatpush1.msra.mxu0 0.0
      %958 = vmatprep.subr.mxu0 0.0
      %959 = vmatpush1.msra.mxu0 0.0
      %960 = vmatprep.subr.mxu0 0.0
      %961 = vmatpush1.msra.mxu0 0.0
      %962 = vmatprep.subr.mxu0 0.0
      %963 = vmatpush1.msra.mxu0 0.0
      %964 = vmatprep.subr.mxu0 0.0
      %965 = vmatpush1.msra.mxu0 0.0
      %966 = vmatprep.subr.mxu0 0.0
      %967 = vmatpush1.msra.mxu0 0.0
      %968 = vmatprep.subr.mxu0 0.0
      %969 = vmatpush1.msra.mxu0 0.0
      %970 = vmatprep.subr.mxu0 0.0
      %971 = vmatpush1.msra.mxu0 0.0
      %972 = vmatprep.subr.mxu0 0.0
      %973 = vmatpush1.msra.mxu0 0.0
      %974 = vmatprep.subr.mxu0 0.0
      %975 = vmatpush1.msra.mxu0 0.0
      %976 = vmatprep.subr.mxu0 0.0
      %977 = vmatpush1.msra.mxu0 0.0
      %978 = vmatprep.subr.mxu0 0.0
      %979 = vmatpush1.msra.mxu0 0.0
      %980 = vmatprep.subr.mxu0 0.0
      %981 = vmatpush1.msra.mxu0 0.0
      %982 = vmatprep.subr.mxu0 0.0
      %983 = vmatpush1.msra.mxu0 0.0
      %984 = vmatprep.subr.mxu0 0.0
      %985 = vmatpush1.msra.mxu0 0.0
      %986 = vmatprep.subr.mxu0 0.0
      %987 = vmatpush1.msra.mxu0 0.0
      %988 = vmatprep.subr.mxu0 0.0
      %989 = vmatpush1.msra.mxu0 0.0
      %990 = vmatprep.subr.mxu0 0.0
      %991 = vmatpush1.msra.mxu0 0.0
      %992 = vmatprep.subr.mxu0 0.0
      %993 = vmatpush1.msra.mxu0 0.0
      %994 = vmatprep.subr.mxu0 0.0
      %995 = vmatpush1.msra.mxu0 0.0
      %996 = vmatprep.subr.mxu0 0.0
      %997 = vmatpush1.msra.mxu0 0.0
      %998 = vmatprep.subr.mxu0 0.0
      %999 = vmatpush1.msra.mxu0 0.0
      %1000 = vmatprep.subr.mxu0 0.0
      %1001 = vmatpush1.msra.mxu0 0.0
      %1002 = vmatprep.mubr.f32.mxu0 0.0
      %1003 = vmatmul.mubr.f32.gmra.mrb[0].mxu0 %v936
      %v1004 = vpop.f32.mrb[0].mxu0
      %v1005 = vadd.f32 %v334, %v1004
      %v1006 = vpop.f32.mrb[0].mxu0
      %v1007 = vadd.f32 %v335, %v1006
      %1008 = vdwg.mxu0
      %1009 = vst [vmem:[%s305] sm:$0xff] %v1005
      %1010 = vst [vmem:[%s305 + $0x8] sm:$0xff] %v1007
      %p1011 = scmp.lt.s32.totalorder %s19, 1
      %s1012 = scalar_select %p1011, %s19, 1
      %s1013 = smul.addr %s1012, 2
      %s1014 = smul.addr %s1013, 8
      %s1015 = scalar_lea.vmem %s8, %s1014
      // Predicated region
      $region53: #{basic_block_forward.1} parent=51 // pred_check
        %p1016 = pneg %p210
      $region54: #{basic_block_forward.1} parent=51 // pred_check_branch
        %1018 = sbr.rel (%p1016) target = $region56
      $region55: #{basic_block_forward.1} parent=51 // pred_region
        _
      $region56: #{basic_block_forward.1} parent=51 // pred_fallthru
        _
    $region52: #{basic_block_forward.1} parent=5 // pred_fallthru
      _
    %p1019 = scmp.le.s32.totalorder 2, %s14
    // Predicated region
    $region57: #{basic_block_forward.1} parent=5 // pred_check
      %p1020 = pneg %p1019
    $region58: #{basic_block_forward.1} parent=5 // pred_check_branch
      %1022 = sbr.rel (%p1020) target = $region60
    $region59: #{basic_block_forward.1} parent=5 // pred_region
      %s1023 = ssub.s32 %s14, 2
      // Predicated region
      $region61: #{basic_block_forward.1} parent=59 // pred_check
        %p1024 = pneg %p216
      $region62: #{basic_block_forward.1} parent=59 // pred_check_branch
        %1026 = sbr.rel (%p1024) target = $region64
      $region63: #{basic_block_forward.1} parent=59 // pred_region
        %p1027 = scmp.lt.s32.totalorder %s20, 1
        %s1028 = scalar_select %p1027, %s20, 1
        %s1029 = smul.addr %s1028, 2
        %s1030 = smul.addr %s1029, 8
        %s1031 = scalar_lea.vmem %s8, %s1030
      $region64: #{basic_block_forward.1} parent=59 // pred_fallthru
        _
    $region60: #{basic_block_forward.1} parent=5 // pred_fallthru
      _
  $region6: #{basic_block_forward.1} parent=0 // loop_footer
    %s18 = sadd.s32 1, %s14
  $region7: #{basic_block_forward.1} parent=0 // loop_footer_branch
    %13 = sbr.rel target = $region3
  $region8: #{basic_block_forward.1} parent=0 // loop_exit
    _

</llo_original>
